<compile_context>
chip_gen: v6e
topology: v6e:2x2x1
jax: 0.10.0
libtpu: 0.0.40
codegen_flags: <defaults>
</compile_context>

<pallas_src>
import functools

import jax
import jax.numpy as jnp
from jax import lax
from jax.experimental import pallas as pl
from jax.experimental.pallas import tpu as pltpu


# ----------------------------------------------------------------------------
# Fused kernel: 1x1 convs + concat + pad + 3x3 conv + GRU-style gating.
# One grid step processes one (batch*object) image in NHWC.
# ----------------------------------------------------------------------------
def _fused_hidden_update_kernel(xg_ref, h_ref, w1_ref, b1_ref, wt_ref, bt_ref,
                                o_ref, pad_ref, *, H, W, Wp, mid, hidden):
    Cg = xg_ref.shape[-1]
    Cin = mid + hidden
    Cout = 3 * hidden

    # ---- stage 1: fused 1x1 convs: single stacked-K matmul (bf16 -> f32) ----
    xg = xg_ref[0].reshape(H * W, Cg)                       # bf16
    g_mid = jnp.dot(xg, w1_ref[...],
                    preferred_element_type=jnp.float32) + b1_ref[...]

    h = h_ref[0]                                            # (H, W, hidden) f32

    # ---- stage 2: build zero-padded [g_mid, h] buffer in VMEM scratch --------
    # (re-zeroed every step: scratch is per-core and cheap to memset)
    pad_ref[...] = jnp.zeros_like(pad_ref)
    cat = jnp.concatenate([g_mid.reshape(H, W, mid), h], axis=-1)
    pad_ref[1:H + 1, 1:W + 1, :] = cat

    # ---- stage 3: 3x3 conv as 9 contiguous row-block matmuls -----------------
    # Taps are grouped by dx: per-dy rows are free outer-dim slices (Wp % 8 == 0
    # keeps the (H, Wp, Cin) -> (H*Wp, Cin) reshape layout-preserving); the dx
    # shift is applied once at the end with three static column slices.
    acc = [jnp.zeros((H * Wp, Cout), jnp.float32) for _ in range(3)]
    for dy in range(3):
        rows = pad_ref[dy:dy + H, :, :].astype(jnp.bfloat16).reshape(H * Wp, Cin)
        for dx in range(3):
            acc[dx] = acc[dx] + jnp.dot(rows, wt_ref[dy * 3 + dx],
                                        preferred_element_type=jnp.float32)
    a0 = acc[0].reshape(H, Wp, Cout)
    a1 = acc[1].reshape(H, Wp, Cout)
    a2 = acc[2].reshape(H, Wp, Cout)
    values = a0[:, 0:W, :] + a1[:, 1:W + 1, :] + a2[:, 2:W + 2, :] + bt_ref[...]

    # ---- stage 4: gating (f32; sigmoid/tanh go to the EUP slot) ---------------
    # TODO(synk): with hidden < 128 these lane slices land mid-vreg; a
    # 128-aligned gate channel layout would remove the lane shuffles.
    forget_gate = jax.nn.sigmoid(values[..., :hidden])
    update_gate = jax.nn.sigmoid(values[..., hidden:2 * hidden])
    new_value = jnp.tanh(values[..., 2 * hidden:])
    new_h = forget_gate * h * (1.0 - update_gate) + update_gate * new_value
    o_ref[...] = new_h.reshape(1, H, W, hidden).astype(o_ref.dtype)


def fused_hidden_update(xg, h_nhwc, w1, b1, wt, bt, *, hidden):
    BN, H, W, Cg = xg.shape
    mid = w1.shape[1]
    Cin = mid + hidden
    Cout = 3 * hidden
    Wp = ((W + 2 + 7) // 8) * 8           # padded width, 8-sublane aligned

    kern = functools.partial(_fused_hidden_update_kernel,
                             H=H, W=W, Wp=Wp, mid=mid, hidden=hidden)

    # VMEM budget: double-buffered per-step blocks + weights + scratch + slack.
    blk_bytes = H * W * (Cg * 2 + hidden * 4 + hidden * 4)
    wgt_bytes = Cg * mid * 2 + mid * 4 + 9 * Cin * Cout * 2 + Cout * 4
    scratch_bytes = (H + 2) * Wp * Cin * 4
    est = 2 * (blk_bytes + wgt_bytes) + scratch_bytes + (4 << 20)
    vmem_limit = int(min(max(est, 16 << 20), 100 << 20))

    return pl.pallas_call(
        kern,
        out_shape=jax.ShapeDtypeStruct((BN, H, W, hidden), jnp.float32),
        grid_spec=pltpu.PrefetchScalarGridSpec(
            num_scalar_prefetch=0,
            grid=(BN,),
            in_specs=[
                pl.BlockSpec((1, H, W, Cg), lambda i: (i, 0, 0, 0)),
                pl.BlockSpec((1, H, W, hidden), lambda i: (i, 0, 0, 0)),
                pl.BlockSpec((Cg, mid), lambda i: (0, 0)),
                pl.BlockSpec((1, mid), lambda i: (0, 0)),
                pl.BlockSpec((9, Cin, Cout), lambda i: (0, 0, 0)),
                pl.BlockSpec((1, Cout), lambda i: (0, 0)),
            ],
            out_specs=pl.BlockSpec((1, H, W, hidden), lambda i: (i, 0, 0, 0)),
            scratch_shapes=[pltpu.VMEM((H + 2, Wp, Cin), jnp.float32)],
        ),
        compiler_params=pltpu.CompilerParams(
            dimension_semantics=("parallel",),
            vmem_limit_bytes=vmem_limit),
    )(xg, h_nhwc, w1, b1, wt, bt)


# ----------------------------------------------------------------------------
# Glue (plain JAX): area-downsample in NCHW FIRST, then one NHWC relayout.
# ----------------------------------------------------------------------------
def _area_downsample_nchw(x, factor):
    # F.interpolate(mode='area', scale=1/factor) == average pooling.
    BN, C, H, W = x.shape
    x = x.reshape(BN, C, H // factor, factor, W // factor, factor)
    return x.mean(axis=(3, 5))


def hidden_updater_forward(params, g0, g1, g2, h):
    B, N, C16, H, W = g0.shape
    hidden = h.shape[2]
    mid = params["w16"].shape[1]
    BN = B * N

    g0f = g0.reshape(BN, C16, H, W)
    g1d = _area_downsample_nchw(g1.reshape(BN, g1.shape[2], 2 * H, 2 * W), 2)
    g2d = _area_downsample_nchw(g2.reshape(BN, g2.shape[2], 4 * H, 4 * W), 4)

    # Single channel concat + NHWC relayout; matmul-only operands cast to bf16.
    xg = jnp.concatenate([g0f, g1d, g2d], axis=1)            # [BN, Cg, H, W]
    xg = jnp.transpose(xg, (0, 2, 3, 1)).astype(jnp.bfloat16)  # [BN, H, W, Cg]
    h_nhwc = jnp.transpose(h.reshape(BN, hidden, H, W), (0, 2, 3, 1))  # f32

    w1 = jnp.concatenate(
        [params["w16"], params["w8"], params["w4"]], axis=0).astype(jnp.bfloat16)
    b1 = (params["b16"] + params["b8"] + params["b4"]).reshape(1, mid)
    wt = params["wt"].reshape(9, mid + hidden, 3 * hidden).astype(jnp.bfloat16)
    bt = params["bt"].reshape(1, 3 * hidden)

    new_h = fused_hidden_update(xg, h_nhwc, w1, b1, wt, bt, hidden=hidden)
    # Module contract returns NCHW [B, N, hidden, H, W].
    # TODO(synk): drop this final relayout if the downstream consumer takes NHWC.
    return jnp.transpose(new_h, (0, 3, 1, 2)).reshape(B, N, hidden, H, W)


# ----------------------------------------------------------------------------
# Pure-JAX f32 reference (mirrors the PyTorch forward) for correctness check.
# ----------------------------------------------------------------------------
def _to_nhwc_flat(x):
    B, N = x.shape[:2]
    x = x.reshape((B * N,) + x.shape[2:])
    return jnp.transpose(x, (0, 2, 3, 1))


def _area_downsample_nhwc(x, factor):
    BN, H, W, C = x.shape
    x = x.reshape(BN, H // factor, factor, W // factor, factor, C)
    return x.mean(axis=(2, 4))


def reference_forward(params, g0, g1, g2, h):
    B, N = g0.shape[:2]
    H, W = g0.shape[-2:]
    hidden = h.shape[2]

    x16 = _to_nhwc_flat(g0)
    x8 = _area_downsample_nhwc(_to_nhwc_flat(g1), 2)
    x4 = _area_downsample_nhwc(_to_nhwc_flat(g2), 4)
    h_nhwc = _to_nhwc_flat(h)

    g_mid = (jnp.einsum("bhwc,cm->bhwm", x16, params["w16"])
             + jnp.einsum("bhwc,cm->bhwm", x8, params["w8"])
             + jnp.einsum("bhwc,cm->bhwm", x4, params["w4"])
             + (params["b16"] + params["b8"] + params["b4"]))
    x = jnp.concatenate([g_mid, h_nhwc], axis=-1)
    values = lax.conv_general_dilated(
        x, params["wt"], window_strides=(1, 1), padding="SAME",
        dimension_numbers=("NHWC", "HWIO", "NHWC")) + params["bt"]
    forget_gate = jax.nn.sigmoid(values[..., :hidden])
    update_gate = jax.nn.sigmoid(values[..., hidden:2 * hidden])
    new_value = jnp.tanh(values[..., 2 * hidden:])
    new_h = forget_gate * h_nhwc * (1.0 - update_gate) + update_gate * new_value
    return jnp.transpose(new_h, (0, 3, 1, 2)).reshape(B, N, hidden, H, W)


if __name__ == "__main__":
    B, N = 2, 2                  # batch, num objects (group dim)
    H = W = 8                    # spatial size at 1/16 scale
    g_dims = (16, 12, 8)         # channels of g[0] (1/16), g[1] (1/8), g[2] (1/4)
    mid_dim = 32
    hidden_dim = 32

    key = jax.random.PRNGKey(0)
    keys = jax.random.split(key, 12)

    g0 = jax.random.normal(keys[0], (B, N, g_dims[0], H, W), jnp.float32)
    g1 = jax.random.normal(keys[1], (B, N, g_dims[1], 2 * H, 2 * W), jnp.float32)
    g2 = jax.random.normal(keys[2], (B, N, g_dims[2], 4 * H, 4 * W), jnp.float32)
    h = jax.random.normal(keys[3], (B, N, hidden_dim, H, W), jnp.float32)

    cin = mid_dim + hidden_dim
    cout = 3 * hidden_dim
    xavier_std = (2.0 / (9 * cin + 9 * cout)) ** 0.5   # xavier_normal_ on 3x3 conv
    params = {
        "w16": jax.random.normal(keys[4], (g_dims[0], mid_dim), jnp.float32) * 0.1,
        "b16": jax.random.normal(keys[5], (mid_dim,), jnp.float32) * 0.05,
        "w8": jax.random.normal(keys[6], (g_dims[1], mid_dim), jnp.float32) * 0.1,
        "b8": jax.random.normal(keys[7], (mid_dim,), jnp.float32) * 0.05,
        "w4": jax.random.normal(keys[8], (g_dims[2], mid_dim), jnp.float32) * 0.1,
        "b4": jax.random.normal(keys[9], (mid_dim,), jnp.float32) * 0.05,
        "wt": jax.random.normal(keys[10], (3, 3, cin, cout), jnp.float32) * xavier_std,
        "bt": jax.random.normal(keys[11], (cout,), jnp.float32) * 0.05,
    }

    out = hidden_updater_forward(params, g0, g1, g2, h)
    out = jax.block_until_ready(out)

    ref = reference_forward(params, g0, g1, g2, h)
    assert out.shape == (B, N, hidden_dim, H, W), out.shape
    # Tolerance loosened vs the f32 reference because the kernel uses bf16
    # matmul operands (f32 accumulation); genuine bugs give O(0.3+) errors.
    assert jnp.allclose(out, ref, atol=6e-2, rtol=6e-2), \
        float(jnp.max(jnp.abs(out - ref)))
    print("KERNEL_OK")
</pallas_src>

<mosaic_0001>
module attributes {stable_mosaic.version = 11 : i64} {
  func.func @_fused_hidden_update_kernel(%arg0: i32, %arg1: memref<1x8x8x36xbf16, #tpu.memory_space<vmem>>, %arg2: memref<1x8x8x32xf32, #tpu.memory_space<vmem>>, %arg3: memref<36x32xbf16, #tpu.memory_space<vmem>>, %arg4: memref<1x32xf32, #tpu.memory_space<vmem>>, %arg5: memref<9x64x96xbf16, #tpu.memory_space<vmem>>, %arg6: memref<1x96xf32, #tpu.memory_space<vmem>>, %arg7: memref<1x8x8x32xf32, #tpu.memory_space<vmem>>, %arg8: memref<10x16x64xf32, #tpu.memory_space<vmem>>) attributes {dimension_semantics = [#tpu.dimension_semantics<parallel>], iteration_bounds = array<i64: 4>, scalar_prefetch = 0 : i64, scratch_operands = 1 : i64, tpu.core_type = #tpu.core_type<tc>, window_params = [{transform_indices = @transform_0, window_bounds = array<i64: 1, 8, 8, 36>}, {transform_indices = @transform_1, window_bounds = array<i64: 1, 8, 8, 32>}, {pipeline_mode = #tpu.pipeline_mode<synchronous>, transform_indices = @transform_2, window_bounds = array<i64: 36, 32>}, {pipeline_mode = #tpu.pipeline_mode<synchronous>, transform_indices = @transform_3, window_bounds = array<i64: 1, 32>}, {pipeline_mode = #tpu.pipeline_mode<synchronous>, transform_indices = @transform_4, window_bounds = array<i64: 9, 64, 96>}, {pipeline_mode = #tpu.pipeline_mode<synchronous>, transform_indices = @transform_5, window_bounds = array<i64: 1, 96>}, {transform_indices = @transform_6, window_bounds = array<i64: 1, 8, 8, 32>}]} {
    %c0 = arith.constant 0 : index
    %c0_0 = arith.constant 0 : index
    %c0_1 = arith.constant 0 : index
    %c0_2 = arith.constant 0 : index
    %0 = vector.load %arg1[%c0, %c0_0, %c0_1, %c0_2] : memref<1x8x8x36xbf16, #tpu.memory_space<vmem>>, vector<1x8x8x36xbf16>
    %1 = vector.shape_cast %0 : vector<1x8x8x36xbf16> to vector<8x8x36xbf16>
    %2 = vector.shape_cast %1 : vector<8x8x36xbf16> to vector<64x36xbf16>
    %c0_3 = arith.constant 0 : index
    %c0_4 = arith.constant 0 : index
    %3 = vector.load %arg3[%c0_3, %c0_4] : memref<36x32xbf16, #tpu.memory_space<vmem>>, vector<36x32xbf16>
    %cst = arith.constant dense<0.000000e+00> : vector<64x32xf32>
    %4 = tpu.matmul %2, %3, %cst {dimension_numbers = #tpu.dot_dimension_numbers<[1], [0], [0], [1], [0, 0, 1, 1], [], []>} : vector<64x36xbf16>, vector<36x32xbf16>, vector<64x32xf32> -> vector<64x32xf32>
    %c0_5 = arith.constant 0 : index
    %c0_6 = arith.constant 0 : index
    %5 = vector.load %arg4[%c0_5, %c0_6] : memref<1x32xf32, #tpu.memory_space<vmem>>, vector<1x32xf32>
    %6 = vector.broadcast %5 : vector<1x32xf32> to vector<64x32xf32>
    %7 = arith.addf %4, %6 : vector<64x32xf32>
    %c0_7 = arith.constant 0 : index
    %c0_8 = arith.constant 0 : index
    %c0_9 = arith.constant 0 : index
    %c0_10 = arith.constant 0 : index
    %8 = vector.load %arg2[%c0_7, %c0_8, %c0_9, %c0_10] : memref<1x8x8x32xf32, #tpu.memory_space<vmem>>, vector<1x8x8x32xf32>
    %9 = vector.shape_cast %8 : vector<1x8x8x32xf32> to vector<8x8x32xf32>
    %cst_11 = arith.constant 0.000000e+00 : f32
    %10 = vector.broadcast %cst_11 : f32 to vector<10x16x64xf32>
    %c0_12 = arith.constant 0 : index
    %c0_13 = arith.constant 0 : index
    %c0_14 = arith.constant 0 : index
    %11 = vector.load %arg8[%c0_12, %c0_13, %c0_14] : memref<10x16x64xf32, #tpu.memory_space<vmem>>, vector<10x16x64xf32>
    tpu.vector_store %arg8[%c0_12, %c0_13, %c0_14], %10 {strides = array<i32>} : memref<10x16x64xf32, #tpu.memory_space<vmem>>, vector<10x16x64xf32>,
    %12 = vector.shape_cast %7 : vector<64x32xf32> to vector<8x8x32xf32>
    %13 = tpu.concatenate %12, %9 in 2 : vector<8x8x32xf32>, vector<8x8x32xf32> -> vector<8x8x64xf32>
    %c1 = arith.constant 1 : index
    %c1_15 = arith.constant 1 : index
    %c0_16 = arith.constant 0 : index
    %14 = vector.load %arg8[%c1, %c1_15, %c0_16] : memref<10x16x64xf32, #tpu.memory_space<vmem>>, vector<8x8x64xf32>
    tpu.vector_store %arg8[%c1, %c1_15, %c0_16], %13 {strides = array<i32>} : memref<10x16x64xf32, #tpu.memory_space<vmem>>, vector<8x8x64xf32>,
    %cst_17 = arith.constant 0.000000e+00 : f32
    %15 = vector.broadcast %cst_17 : f32 to vector<128x96xf32>
    %cst_18 = arith.constant 0.000000e+00 : f32
    %16 = vector.broadcast %cst_18 : f32 to vector<128x96xf32>
    %cst_19 = arith.constant 0.000000e+00 : f32
    %17 = vector.broadcast %cst_19 : f32 to vector<128x96xf32>
    %c0_20 = arith.constant 0 : index
    %c0_21 = arith.constant 0 : index
    %c0_22 = arith.constant 0 : index
    %18 = vector.load %arg8[%c0_20, %c0_21, %c0_22] : memref<10x16x64xf32, #tpu.memory_space<vmem>>, vector<8x16x64xf32>
    %19 = arith.truncf %18 : vector<8x16x64xf32> to vector<8x16x64xbf16>
    %20 = vector.shape_cast %19 : vector<8x16x64xbf16> to vector<128x64xbf16>
    %c0_23 = arith.constant 0 : index
    %c0_24 = arith.constant 0 : index
    %c0_25 = arith.constant 0 : index
    %21 = vector.load %arg5[%c0_23, %c0_24, %c0_25] : memref<9x64x96xbf16, #tpu.memory_space<vmem>>, vector<1x64x96xbf16>
    %22 = vector.shape_cast %21 : vector<1x64x96xbf16> to vector<64x96xbf16>
    %cst_26 = arith.constant dense<0.000000e+00> : vector<128x96xf32>
    %23 = tpu.matmul %20, %22, %cst_26 {dimension_numbers = #tpu.dot_dimension_numbers<[1], [0], [0], [1], [0, 0, 1, 1], [], []>} : vector<128x64xbf16>, vector<64x96xbf16>, vector<128x96xf32> -> vector<128x96xf32>
    %24 = arith.addf %15, %23 : vector<128x96xf32>
    %c1_27 = arith.constant 1 : index
    %c0_28 = arith.constant 0 : index
    %c0_29 = arith.constant 0 : index
    %25 = vector.load %arg5[%c1_27, %c0_28, %c0_29] : memref<9x64x96xbf16, #tpu.memory_space<vmem>>, vector<1x64x96xbf16>
    %26 = vector.shape_cast %25 : vector<1x64x96xbf16> to vector<64x96xbf16>
    %cst_30 = arith.constant dense<0.000000e+00> : vector<128x96xf32>
    %27 = tpu.matmul %20, %26, %cst_30 {dimension_numbers = #tpu.dot_dimension_numbers<[1], [0], [0], [1], [0, 0, 1, 1], [], []>} : vector<128x64xbf16>, vector<64x96xbf16>, vector<128x96xf32> -> vector<128x96xf32>
    %28 = arith.addf %16, %27 : vector<128x96xf32>
    %c2 = arith.constant 2 : index
    %c0_31 = arith.constant 0 : index
    %c0_32 = arith.constant 0 : index
    %29 = vector.load %arg5[%c2, %c0_31, %c0_32] : memref<9x64x96xbf16, #tpu.memory_space<vmem>>, vector<1x64x96xbf16>
    %30 = vector.shape_cast %29 : vector<1x64x96xbf16> to vector<64x96xbf16>
    %cst_33 = arith.constant dense<0.000000e+00> : vector<128x96xf32>
    %31 = tpu.matmul %20, %30, %cst_33 {dimension_numbers = #tpu.dot_dimension_numbers<[1], [0], [0], [1], [0, 0, 1, 1], [], []>} : vector<128x64xbf16>, vector<64x96xbf16>, vector<128x96xf32> -> vector<128x96xf32>
    %32 = arith.addf %17, %31 : vector<128x96xf32>
    %c1_34 = arith.constant 1 : index
    %c0_35 = arith.constant 0 : index
    %c0_36 = arith.constant 0 : index
    %33 = vector.load %arg8[%c1_34, %c0_35, %c0_36] : memref<10x16x64xf32, #tpu.memory_space<vmem>>, vector<8x16x64xf32>
    %34 = arith.truncf %33 : vector<8x16x64xf32> to vector<8x16x64xbf16>
    %35 = vector.shape_cast %34 : vector<8x16x64xbf16> to vector<128x64xbf16>
    %c3 = arith.constant 3 : index
    %c0_37 = arith.constant 0 : index
    %c0_38 = arith.constant 0 : index
    %36 = vector.load %arg5[%c3, %c0_37, %c0_38] : memref<9x64x96xbf16, #tpu.memory_space<vmem>>, vector<1x64x96xbf16>
    %37 = vector.shape_cast %36 : vector<1x64x96xbf16> to vector<64x96xbf16>
    %cst_39 = arith.constant dense<0.000000e+00> : vector<128x96xf32>
    %38 = tpu.matmul %35, %37, %cst_39 {dimension_numbers = #tpu.dot_dimension_numbers<[1], [0], [0], [1], [0, 0, 1, 1], [], []>} : vector<128x64xbf16>, vector<64x96xbf16>, vector<128x96xf32> -> vector<128x96xf32>
    %39 = arith.addf %24, %38 : vector<128x96xf32>
    %c4 = arith.constant 4 : index
    %c0_40 = arith.constant 0 : index
    %c0_41 = arith.constant 0 : index
    %40 = vector.load %arg5[%c4, %c0_40, %c0_41] : memref<9x64x96xbf16, #tpu.memory_space<vmem>>, vector<1x64x96xbf16>
    %41 = vector.shape_cast %40 : vector<1x64x96xbf16> to vector<64x96xbf16>
    %cst_42 = arith.constant dense<0.000000e+00> : vector<128x96xf32>
    %42 = tpu.matmul %35, %41, %cst_42 {dimension_numbers = #tpu.dot_dimension_numbers<[1], [0], [0], [1], [0, 0, 1, 1], [], []>} : vector<128x64xbf16>, vector<64x96xbf16>, vector<128x96xf32> -> vector<128x96xf32>
    %43 = arith.addf %28, %42 : vector<128x96xf32>
    %c5 = arith.constant 5 : index
    %c0_43 = arith.constant 0 : index
    %c0_44 = arith.constant 0 : index
    %44 = vector.load %arg5[%c5, %c0_43, %c0_44] : memref<9x64x96xbf16, #tpu.memory_space<vmem>>, vector<1x64x96xbf16>
    %45 = vector.shape_cast %44 : vector<1x64x96xbf16> to vector<64x96xbf16>
    %cst_45 = arith.constant dense<0.000000e+00> : vector<128x96xf32>
    %46 = tpu.matmul %35, %45, %cst_45 {dimension_numbers = #tpu.dot_dimension_numbers<[1], [0], [0], [1], [0, 0, 1, 1], [], []>} : vector<128x64xbf16>, vector<64x96xbf16>, vector<128x96xf32> -> vector<128x96xf32>
    %47 = arith.addf %32, %46 : vector<128x96xf32>
    %c2_46 = arith.constant 2 : index
    %c0_47 = arith.constant 0 : index
    %c0_48 = arith.constant 0 : index
    %48 = vector.load %arg8[%c2_46, %c0_47, %c0_48] : memref<10x16x64xf32, #tpu.memory_space<vmem>>, vector<8x16x64xf32>
    %49 = arith.truncf %48 : vector<8x16x64xf32> to vector<8x16x64xbf16>
    %50 = vector.shape_cast %49 : vector<8x16x64xbf16> to vector<128x64xbf16>
    %c6 = arith.constant 6 : index
    %c0_49 = arith.constant 0 : index
    %c0_50 = arith.constant 0 : index
    %51 = vector.load %arg5[%c6, %c0_49, %c0_50] : memref<9x64x96xbf16, #tpu.memory_space<vmem>>, vector<1x64x96xbf16>
    %52 = vector.shape_cast %51 : vector<1x64x96xbf16> to vector<64x96xbf16>
    %cst_51 = arith.constant dense<0.000000e+00> : vector<128x96xf32>
    %53 = tpu.matmul %50, %52, %cst_51 {dimension_numbers = #tpu.dot_dimension_numbers<[1], [0], [0], [1], [0, 0, 1, 1], [], []>} : vector<128x64xbf16>, vector<64x96xbf16>, vector<128x96xf32> -> vector<128x96xf32>
    %54 = arith.addf %39, %53 : vector<128x96xf32>
    %c7 = arith.constant 7 : index
    %c0_52 = arith.constant 0 : index
    %c0_53 = arith.constant 0 : index
    %55 = vector.load %arg5[%c7, %c0_52, %c0_53] : memref<9x64x96xbf16, #tpu.memory_space<vmem>>, vector<1x64x96xbf16>
    %56 = vector.shape_cast %55 : vector<1x64x96xbf16> to vector<64x96xbf16>
    %cst_54 = arith.constant dense<0.000000e+00> : vector<128x96xf32>
    %57 = tpu.matmul %50, %56, %cst_54 {dimension_numbers = #tpu.dot_dimension_numbers<[1], [0], [0], [1], [0, 0, 1, 1], [], []>} : vector<128x64xbf16>, vector<64x96xbf16>, vector<128x96xf32> -> vector<128x96xf32>
    %58 = arith.addf %43, %57 : vector<128x96xf32>
    %c8 = arith.constant 8 : index
    %c0_55 = arith.constant 0 : index
    %c0_56 = arith.constant 0 : index
    %59 = vector.load %arg5[%c8, %c0_55, %c0_56] : memref<9x64x96xbf16, #tpu.memory_space<vmem>>, vector<1x64x96xbf16>
    %60 = vector.shape_cast %59 : vector<1x64x96xbf16> to vector<64x96xbf16>
    %cst_57 = arith.constant dense<0.000000e+00> : vector<128x96xf32>
    %61 = tpu.matmul %50, %60, %cst_57 {dimension_numbers = #tpu.dot_dimension_numbers<[1], [0], [0], [1], [0, 0, 1, 1], [], []>} : vector<128x64xbf16>, vector<64x96xbf16>, vector<128x96xf32> -> vector<128x96xf32>
    %62 = arith.addf %47, %61 : vector<128x96xf32>
    %63 = vector.shape_cast %54 : vector<128x96xf32> to vector<8x16x96xf32>
    %64 = vector.shape_cast %58 : vector<128x96xf32> to vector<8x16x96xf32>
    %65 = vector.shape_cast %62 : vector<128x96xf32> to vector<8x16x96xf32>
    %66 = vector.extract_strided_slice %63 {offsets = [0, 0, 0], sizes = [8, 8, 96], strides = [1, 1, 1]} : vector<8x16x96xf32> to vector<8x8x96xf32>
    %67 = vector.extract_strided_slice %64 {offsets = [0, 1, 0], sizes = [8, 8, 96], strides = [1, 1, 1]} : vector<8x16x96xf32> to vector<8x8x96xf32>
    %68 = arith.addf %66, %67 : vector<8x8x96xf32>
    %69 = vector.extract_strided_slice %65 {offsets = [0, 2, 0], sizes = [8, 8, 96], strides = [1, 1, 1]} : vector<8x16x96xf32> to vector<8x8x96xf32>
    %70 = arith.addf %68, %69 : vector<8x8x96xf32>
    %c0_58 = arith.constant 0 : index
    %c0_59 = arith.constant 0 : index
    %71 = vector.load %arg6[%c0_58, %c0_59] : memref<1x96xf32, #tpu.memory_space<vmem>>, vector<1x96xf32>
    %72 = vector.shape_cast %71 : vector<1x96xf32> to vector<1x1x96xf32>
    %73 = vector.broadcast %72 : vector<1x1x96xf32> to vector<8x8x96xf32>
    %74 = arith.addf %70, %73 : vector<8x8x96xf32>
    %75 = vector.extract_strided_slice %74 {offsets = [0, 0, 0], sizes = [8, 8, 32], strides = [1, 1, 1]} : vector<8x8x96xf32> to vector<8x8x32xf32>
    %76 = arith.negf %75 : vector<8x8x32xf32>
    %77 = math.exp %76 : vector<8x8x32xf32>
    %cst_60 = arith.constant 1.000000e+00 : f32
    %78 = vector.broadcast %cst_60 : f32 to vector<8x8x32xf32>
    %79 = arith.addf %78, %77 : vector<8x8x32xf32>
    %80 = arith.divf %78, %79 : vector<8x8x32xf32>
    %81 = vector.extract_strided_slice %74 {offsets = [0, 0, 32], sizes = [8, 8, 32], strides = [1, 1, 1]} : vector<8x8x96xf32> to vector<8x8x32xf32>
    %82 = arith.negf %81 : vector<8x8x32xf32>
    %83 = math.exp %82 : vector<8x8x32xf32>
    %cst_61 = arith.constant 1.000000e+00 : f32
    %84 = vector.broadcast %cst_61 : f32 to vector<8x8x32xf32>
    %85 = arith.addf %84, %83 : vector<8x8x32xf32>
    %86 = arith.divf %84, %85 : vector<8x8x32xf32>
    %87 = vector.extract_strided_slice %74 {offsets = [0, 0, 64], sizes = [8, 8, 32], strides = [1, 1, 1]} : vector<8x8x96xf32> to vector<8x8x32xf32>
    %88 = math.tanh %87 : vector<8x8x32xf32>
    %89 = arith.mulf %80, %9 : vector<8x8x32xf32>
    %cst_62 = arith.constant 1.000000e+00 : f32
    %90 = vector.broadcast %cst_62 : f32 to vector<8x8x32xf32>
    %91 = arith.subf %90, %86 : vector<8x8x32xf32>
    %92 = arith.mulf %89, %91 : vector<8x8x32xf32>
    %93 = arith.mulf %86, %88 : vector<8x8x32xf32>
    %94 = arith.addf %92, %93 : vector<8x8x32xf32>
    %95 = vector.shape_cast %94 : vector<8x8x32xf32> to vector<1x8x8x32xf32>
    %c0_63 = arith.constant 0 : index
    %c0_64 = arith.constant 0 : index
    %c0_65 = arith.constant 0 : index
    %c0_66 = arith.constant 0 : index
    %96 = vector.load %arg7[%c0_63, %c0_64, %c0_65, %c0_66] : memref<1x8x8x32xf32, #tpu.memory_space<vmem>>, vector<1x8x8x32xf32>
    tpu.vector_store %arg7[%c0_63, %c0_64, %c0_65, %c0_66], %95 {strides = array<i32>} : memref<1x8x8x32xf32, #tpu.memory_space<vmem>>, vector<1x8x8x32xf32>,
    return
  }
  func.func @transform_0(%arg0: i32) -> (i32, i32, i32, i32) {
    %c0_i32 = arith.constant 0 : i32
    %c0_i32_0 = arith.constant 0 : i32
    %c0_i32_1 = arith.constant 0 : i32
    %c0_i32_2 = arith.constant 0 : i32
    return %arg0, %c0_i32, %c0_i32_0, %c0_i32_1 : i32, i32, i32, i32
  }
  func.func @transform_1(%arg0: i32) -> (i32, i32, i32, i32) {
    %c0_i32 = arith.constant 0 : i32
    %c0_i32_0 = arith.constant 0 : i32
    %c0_i32_1 = arith.constant 0 : i32
    %c0_i32_2 = arith.constant 0 : i32
    return %arg0, %c0_i32, %c0_i32_0, %c0_i32_1 : i32, i32, i32, i32
  }
  func.func @transform_2(%arg0: i32) -> (i32, i32) {
    %c0_i32 = arith.constant 0 : i32
    %c0_i32_0 = arith.constant 0 : i32
    %c0_i32_1 = arith.constant 0 : i32
    return %c0_i32, %c0_i32_0 : i32, i32
  }
  func.func @transform_3(%arg0: i32) -> (i32, i32) {
    %c0_i32 = arith.constant 0 : i32
    %c0_i32_0 = arith.constant 0 : i32
    %c0_i32_1 = arith.constant 0 : i32
    return %c0_i32, %c0_i32_0 : i32, i32
  }
  func.func @transform_4(%arg0: i32) -> (i32, i32, i32) {
    %c0_i32 = arith.constant 0 : i32
    %c0_i32_0 = arith.constant 0 : i32
    %c0_i32_1 = arith.constant 0 : i32
    %c0_i32_2 = arith.constant 0 : i32
    return %c0_i32, %c0_i32_0, %c0_i32_1 : i32, i32, i32
  }
  func.func @transform_5(%arg0: i32) -> (i32, i32) {
    %c0_i32 = arith.constant 0 : i32
    %c0_i32_0 = arith.constant 0 : i32
    %c0_i32_1 = arith.constant 0 : i32
    return %c0_i32, %c0_i32_0 : i32, i32
  }
  func.func @transform_6(%arg0: i32) -> (i32, i32, i32, i32) {
    %c0_i32 = arith.constant 0 : i32
    %c0_i32_0 = arith.constant 0 : i32
    %c0_i32_1 = arith.constant 0 : i32
    %c0_i32_2 = arith.constant 0 : i32
    return %arg0, %c0_i32, %c0_i32_0, %c0_i32_1 : i32, i32, i32, i32
  }
}

</mosaic_0001>

<llo_original>
// kernel: tpu_custom_call.1
$region0: #{tpu_custom_call.1}
  #allocation0 [shape = 'u32[]', space=smem, size = 0x4, offset = 0x4, fixed_abs, tag = 'smem constant byte address 0x4 - core index']
  #allocation1 [shape = 'u32[144,128]{1,0:T(1,128)}', space=vmem, size = 0x12000, scoped, tag = 'internal scratch']
  #allocation2 [shape = 'f32[10,16,64]{2,1,0:T(8,128)}', space=vmem, size = 0x14000, scoped, tag = 'scratch operand']
  %s0 = inlined_call_operand.hbm [shape: bf16[4,8,8,36], index: 0, kind: input, shape index: {}]
  %s1 = inlined_call_operand.hbm [shape: f32[4,8,8,32], index: 1, kind: input, shape index: {}]
  %s2 = inlined_call_operand.vmem [shape: bf16[36,32], index: 2, kind: input, shape index: {}]
  %s3 = inlined_call_operand.vmem [shape: f32[1,32], index: 3, kind: input, shape index: {}]
  %s4 = inlined_call_operand.hbm [shape: bf16[9,64,96], index: 4, kind: input, shape index: {}]
  %s5 = inlined_call_operand.vmem [shape: f32[1,96], index: 5, kind: input, shape index: {}]
  %s6 = inlined_call_operand.hbm [shape: f32[4,8,8,32], index: 6, kind: output, shape index: {}]
  %s7 = sld [smem:[#allocation0]]
  $region69: #{tpu_custom_call.1} parent=0
    _
  %s9 = ssub.s32 1, %s7
  %s10 = scalar_select 0, %s9, %s7
  $region1: #{tpu_custom_call.1} parent=0
    #allocation3 [shape = 'u8[32768]{0}', space=vmem, size = 0x8000, scoped, tag = 'input window, operand 0']
    #allocation4 [shape = 's32[2]{0}', space=sflag, size = 0x8, scoped, tag = 'scoped memory for tpu_custom_call.1']
    #allocation5 [shape = 's32[2]{0}', space=sflag, size = 0x8, scoped, tag = 'scoped memory for tpu_custom_call.1']
    #allocation6 [shape = 'u8[65536]{0}', space=vmem, size = 0x10000, scoped, tag = 'input window, operand 1']
    #allocation7 [shape = 's32[2]{0}', space=sflag, size = 0x8, scoped, tag = 'scoped memory for tpu_custom_call.1']
    #allocation8 [shape = 'u8[147456]{0}', space=vmem, size = 0x24000, scoped, tag = 'input window, operand 4, single buffered']
    #allocation9 [shape = 'u8[65536]{0}', space=vmem, size = 0x10000, scoped, tag = 'output window, operand 0']
    %11 = vsyncpa [#allocation4], 0
    %s12 = scalar_lea.sflag [#allocation4], 1
    %13 = vsyncpa %s12, 0
    %14 = vsyncpa [#allocation7], 0
    %s15 = scalar_lea.sflag [#allocation7], 1
    %16 = vsyncpa %s15, 0
    %17 = vsyncpa [#allocation5], 0
    %s18 = scalar_lea.sflag [#allocation5], 1
    %19 = vsyncpa %s18, 0
    loop: start=0, step=1, limit=6
    $region2: #{tpu_custom_call.1} parent=1 // loop_pre_header
      _
    $region3: #{tpu_custom_call.1} parent=1 // loop_header
      %s21 = sphi 0, %s25
      %p22 = scmp.ge.s32.totalorder %s21, 6
      %s31 = sphi 0, %s33
      %s34 = sphi 0, %s31
      %s35 = sphi 0, %s34
      %s51 = sphi 0, %s35
      %s57 = sphi 0, %s59
      %s60 = sphi 0, %s57
      %s61 = sphi 0, %s60
      %s77 = sphi 0, %s61
      %s81 = sphi 0, %s81
      %s83 = sphi 0, %s81
      %s84 = sphi 0, %s83
      %s98 = sphi 0, %s84
      %s102 = sphi 0, %s102
      %s104 = sphi 0, %s102
      %s105 = sphi 0, %s104
      %s119 = sphi 0, %s105
      %s123 = sphi 0, %s123
      %s125 = sphi 0, %s123
      %s126 = sphi 0, %s125
      %s140 = sphi 0, %s126
      %s144 = sphi 0, %s144
      %s146 = sphi 0, %s144
      %s147 = sphi 0, %s146
      %s161 = sphi 0, %s147
      %s167 = sphi 0, %s169
      %s170 = sphi 0, %s167
      %s171 = sphi 0, %s170
      %s187 = sphi 0, %s171
    $region4: #{tpu_custom_call.1} parent=1 // loop_header_branch
      %24 = sbr.rel (%p22) target = $region8
    $region5: #{tpu_custom_call.1} parent=1 // loop_body
      %s26 = ssub.s32 %s21, 1
      %s27 = ssub.s32 %s21, 2
      %s28 = sadd.s32 %s21, 1
      %s29 = ssub.s32 %s21, %s28
      %p30 = scmp.eq.s32.totalorder %s29, 0
      %s32 = sadd.s32 %s31, 1
      %s33 = scalar_select %p30, %s31, %s32
      %p36 = pneg %p30
      %p37 = scmp.eq.s32.totalorder %s21, 3
      %p38 = por %p36, %p37
      %p39 = scmp.ne.s32.totalorder %s31, %s34
      %p40 = scmp.eq.s32.totalorder %s21, 0
      %p41 = por %p39, %p40
      %p42 = scmp.ne.s32.totalorder %s31, %s34
      %p43 = scmp.eq.s32.totalorder %s26, 3
      %p44 = por %p42, %p43
      %p45 = scmp.ne.s32.totalorder %s34, %s35
      %p46 = scmp.eq.s32.totalorder %s26, 0
      %p47 = por %p45, %p46
      %p48 = scmp.ne.s32.totalorder %s34, %s35
      %p49 = scmp.eq.s32.totalorder %s27, 3
      %p50 = por %p48, %p49
      %p52 = scmp.ne.s32.totalorder %s35, %s51
      %p53 = scmp.eq.s32.totalorder %s27, 0
      %p54 = por %p52, %p53
      %s55 = ssub.s32 %s21, %s28
      %p56 = scmp.eq.s32.totalorder %s55, 0
      %s58 = sadd.s32 %s57, 1
      %s59 = scalar_select %p56, %s57, %s58
      %p62 = pneg %p56
      %p63 = scmp.eq.s32.totalorder %s21, 3
      %p64 = por %p62, %p63
      %p65 = scmp.ne.s32.totalorder %s57, %s60
      %p66 = scmp.eq.s32.totalorder %s21, 0
      %p67 = por %p65, %p66
      %p68 = scmp.ne.s32.totalorder %s57, %s60
      %p69 = scmp.eq.s32.totalorder %s26, 3
      %p70 = por %p68, %p69
      %p71 = scmp.ne.s32.totalorder %s60, %s61
      %p72 = scmp.eq.s32.totalorder %s26, 0
      %p73 = por %p71, %p72
      %p74 = scmp.ne.s32.totalorder %s60, %s61
      %p75 = scmp.eq.s32.totalorder %s27, 3
      %p76 = por %p74, %p75
      %p78 = scmp.ne.s32.totalorder %s61, %s77
      %p79 = scmp.eq.s32.totalorder %s27, 0
      %p80 = por %p78, %p79
      %s82 = sadd.s32 %s81, 1
      %p85 = scmp.eq.s32.totalorder %s21, 3
      %p86 = scmp.ne.s32.totalorder %s81, %s83
      %p87 = scmp.eq.s32.totalorder %s21, 0
      %p88 = por %p86, %p87
      %p89 = scmp.ne.s32.totalorder %s81, %s83
      %p90 = scmp.eq.s32.totalorder %s26, 3
      %p91 = por %p89, %p90
      %p92 = scmp.ne.s32.totalorder %s83, %s84
      %p93 = scmp.eq.s32.totalorder %s26, 0
      %p94 = por %p92, %p93
      %p95 = scmp.ne.s32.totalorder %s83, %s84
      %p96 = scmp.eq.s32.totalorder %s27, 3
      %p97 = por %p95, %p96
      %p99 = scmp.ne.s32.totalorder %s84, %s98
      %p100 = scmp.eq.s32.totalorder %s27, 0
      %p101 = por %p99, %p100
      %s103 = sadd.s32 %s102, 1
      %p106 = scmp.eq.s32.totalorder %s21, 3
      %p107 = scmp.ne.s32.totalorder %s102, %s104
      %p108 = scmp.eq.s32.totalorder %s21, 0
      %p109 = por %p107, %p108
      %p110 = scmp.ne.s32.totalorder %s102, %s104
      %p111 = scmp.eq.s32.totalorder %s26, 3
      %p112 = por %p110, %p111
      %p113 = scmp.ne.s32.totalorder %s104, %s105
      %p114 = scmp.eq.s32.totalorder %s26, 0
      %p115 = por %p113, %p114
      %p116 = scmp.ne.s32.totalorder %s104, %s105
      %p117 = scmp.eq.s32.totalorder %s27, 3
      %p118 = por %p116, %p117
      %p120 = scmp.ne.s32.totalorder %s105, %s119
      %p121 = scmp.eq.s32.totalorder %s27, 0
      %p122 = por %p120, %p121
      %s124 = sadd.s32 %s123, 1
      %p127 = scmp.eq.s32.totalorder %s21, 3
      %p128 = scmp.ne.s32.totalorder %s123, %s125
      %p129 = scmp.eq.s32.totalorder %s21, 0
      %p130 = por %p128, %p129
      %p131 = scmp.ne.s32.totalorder %s123, %s125
      %p132 = scmp.eq.s32.totalorder %s26, 3
      %p133 = por %p131, %p132
      %p134 = scmp.ne.s32.totalorder %s125, %s126
      %p135 = scmp.eq.s32.totalorder %s26, 0
      %p136 = por %p134, %p135
      %p137 = scmp.ne.s32.totalorder %s125, %s126
      %p138 = scmp.eq.s32.totalorder %s27, 3
      %p139 = por %p137, %p138
      %p141 = scmp.ne.s32.totalorder %s126, %s140
      %p142 = scmp.eq.s32.totalorder %s27, 0
      %p143 = por %p141, %p142
      %s145 = sadd.s32 %s144, 1
      %p148 = scmp.eq.s32.totalorder %s21, 3
      %p149 = scmp.ne.s32.totalorder %s144, %s146
      %p150 = scmp.eq.s32.totalorder %s21, 0
      %p151 = por %p149, %p150
      %p152 = scmp.ne.s32.totalorder %s144, %s146
      %p153 = scmp.eq.s32.totalorder %s26, 3
      %p154 = por %p152, %p153
      %p155 = scmp.ne.s32.totalorder %s146, %s147
      %p156 = scmp.eq.s32.totalorder %s26, 0
      %p157 = por %p155, %p156
      %p158 = scmp.ne.s32.totalorder %s146, %s147
      %p159 = scmp.eq.s32.totalorder %s27, 3
      %p160 = por %p158, %p159
      %p162 = scmp.ne.s32.totalorder %s147, %s161
      %p163 = scmp.eq.s32.totalorder %s27, 0
      %p164 = por %p162, %p163
      %s165 = ssub.s32 %s21, %s28
      %p166 = scmp.eq.s32.totalorder %s165, 0
      %s168 = sadd.s32 %s167, 1
      %s169 = scalar_select %p166, %s167, %s168
      %p172 = pneg %p166
      %p173 = scmp.eq.s32.totalorder %s21, 3
      %p174 = por %p172, %p173
      %p175 = scmp.ne.s32.totalorder %s167, %s170
      %p176 = scmp.eq.s32.totalorder %s21, 0
      %p177 = por %p175, %p176
      %p178 = scmp.ne.s32.totalorder %s167, %s170
      %p179 = scmp.eq.s32.totalorder %s26, 3
      %p180 = por %p178, %p179
      %p181 = scmp.ne.s32.totalorder %s170, %s171
      %p182 = scmp.eq.s32.totalorder %s26, 0
      %p183 = por %p181, %p182
      %p184 = scmp.ne.s32.totalorder %s170, %s171
      %p185 = scmp.eq.s32.totalorder %s27, 3
      %p186 = por %p184, %p185
      %p188 = scmp.ne.s32.totalorder %s171, %s187
      %p189 = scmp.eq.s32.totalorder %s27, 0
      %p190 = por %p188, %p189
      %p191 = scmp.le.s32.totalorder 1, %s21
      %p192 = scmp.lt.s32.totalorder %s21, 5
      %p193 = pnand %p191, %p192
      %p194 = pneg %p193
      // Predicated region
      $region9: #{tpu_custom_call.1} parent=5 // pred_check
        _
      $region10: #{tpu_custom_call.1} parent=5 // pred_check_branch
        %196 = sbr.rel (%p193) target = $region12
      $region11: #{tpu_custom_call.1} parent=5 // pred_region
        %s197 = ssub.s32 %s21, 1
        // Predicated region
        $region13: #{tpu_custom_call.1} parent=11 // pred_check
          %p198 = pneg %p94
        $region14: #{tpu_custom_call.1} parent=11 // pred_check_branch
          %200 = sbr.rel (%p198) target = $region16
        $region15: #{tpu_custom_call.1} parent=11 // pred_region
          _
        $region16: #{tpu_custom_call.1} parent=11 // pred_fallthru
          _
        // Predicated region
        $region17: #{tpu_custom_call.1} parent=11 // pred_check
          %p201 = pneg %p115
        $region18: #{tpu_custom_call.1} parent=11 // pred_check_branch
          %203 = sbr.rel (%p201) target = $region20
        $region19: #{tpu_custom_call.1} parent=11 // pred_region
          _
        $region20: #{tpu_custom_call.1} parent=11 // pred_fallthru
          _
        // Predicated region
        $region21: #{tpu_custom_call.1} parent=11 // pred_check
          %p204 = pneg %p136
        $region22: #{tpu_custom_call.1} parent=11 // pred_check_branch
          %206 = sbr.rel (%p204) target = $region24
        $region23: #{tpu_custom_call.1} parent=11 // pred_region
          %s208 = ssub.s32 4608, 4608
          %209 = vsyncadd [#allocation7], %s208
          %s210 = sshll.u32 [#allocation8], 4
          %s211 = int_to_ptr.vmem [resolvable:$true] %s210
          %216 = dma.hbm_to_vmem [thread:$0]  %s4, 4608, %s211, [#allocation7], 64, 64, 4
        $region24: #{tpu_custom_call.1} parent=11 // pred_fallthru
          _
        // Predicated region
        $region25: #{tpu_custom_call.1} parent=11 // pred_check
          %p217 = pneg %p157
        $region26: #{tpu_custom_call.1} parent=11 // pred_check_branch
          %219 = sbr.rel (%p217) target = $region28
        $region27: #{tpu_custom_call.1} parent=11 // pred_region
          _
        $region28: #{tpu_custom_call.1} parent=11 // pred_fallthru
          _
      $region12: #{tpu_custom_call.1} parent=5 // pred_fallthru
        _
      %p220 = scmp.lt.s32.totalorder %s21, 4
      // Predicated region
      $region29: #{tpu_custom_call.1} parent=5 // pred_check
        %p221 = pneg %p220
      $region30: #{tpu_custom_call.1} parent=5 // pred_check_branch
        %223 = sbr.rel (%p221) target = $region32
      $region31: #{tpu_custom_call.1} parent=5 // pred_region
        // Predicated region
        $region33: #{tpu_custom_call.1} parent=31 // pred_check
          %p224 = pneg %p41
        $region34: #{tpu_custom_call.1} parent=31 // pred_check_branch
          %226 = sbr.rel (%p224) target = $region36
        $region35: #{tpu_custom_call.1} parent=31 // pred_region
          %s227 = sand.u32 %s31, 1
          %s228 = scalar_lea.sflag [#allocation4], %s227
          %s229 = sand.u32 %s31, 1
          %s230 = smul.addr %s229, 32
          %s231 = scalar_lea.vmem [#allocation3], %s230
          %s233 = ssub.s32 512, 512
          %234 = vsyncadd %s228, %s233
          %s235 = smul.addr %s21, 8
          %s236 = smul.addr %s235, 64
          %s237 = scalar_lea.hbm %s0, %s236
          %s238 = sshll.u32 %s231, 4
          %s239 = int_to_ptr.vmem [resolvable:$true] %s238
          %244 = dma.hbm_to_vmem [thread:$0]  %s237, 512, %s239, %s228, 64, 64, 4
        $region36: #{tpu_custom_call.1} parent=31 // pred_fallthru
          _
        // Predicated region
        $region37: #{tpu_custom_call.1} parent=31 // pred_check
          %p245 = pneg %p67
        $region38: #{tpu_custom_call.1} parent=31 // pred_check_branch
          %247 = sbr.rel (%p245) target = $region40
        $region39: #{tpu_custom_call.1} parent=31 // pred_region
          %s248 = sand.u32 %s21, 1
          %s249 = scalar_lea.sflag [#allocation7], %s248
          %s250 = sand.u32 %s57, 1
          %s251 = smul.addr %s250, 64
          %s252 = scalar_lea.vmem [#allocation6], %s251
          %s254 = ssub.s32 1024, 1024
          %255 = vsyncadd %s249, %s254
          %s256 = smul.addr %s21, 8
          %s257 = smul.addr %s256, 128
          %s258 = scalar_lea.hbm %s1, %s257
          %s259 = sshll.u32 %s252, 4
          %s260 = int_to_ptr.vmem [resolvable:$true] %s259
          %265 = dma.hbm_to_vmem [thread:$0]  %s258, 1024, %s260, %s249, 128, 128, 8
        $region40: #{tpu_custom_call.1} parent=31 // pred_fallthru
          _
      $region32: #{tpu_custom_call.1} parent=5 // pred_fallthru
        _
      %p266 = scmp.le.s32.totalorder 1, %s21
      %p267 = scmp.lt.s32.totalorder %s21, 5
      %p268 = pnand %p266, %p267
      %p269 = pneg %p268
      // Predicated region
      $region41: #{tpu_custom_call.1} parent=5 // pred_check
        _
      $region42: #{tpu_custom_call.1} parent=5 // pred_check_branch
        %271 = sbr.rel (%p268) target = $region44
      $region43: #{tpu_custom_call.1} parent=5 // pred_region
        %s272 = ssub.s32 %s21, 1
        %s273 = sand.u32 %s34, 1
        %s274 = scalar_lea.sflag [#allocation4], %s273
        %s275 = sand.u32 %s34, 1
        %s276 = smul.addr %s275, 32
        %s277 = scalar_lea.vmem [#allocation3], %s276
        // Predicated region
        $region45: #{tpu_custom_call.1} parent=43 // pred_check
          %p278 = pneg %p47
        $region46: #{tpu_custom_call.1} parent=43 // pred_check_branch
          %280 = sbr.rel (%p278) target = $region48
        $region47: #{tpu_custom_call.1} parent=43 // pred_region
          %281 = dma.done %s274, 512
        $region48: #{tpu_custom_call.1} parent=43 // pred_fallthru
          _
        %s282 = sand.u32 %s26, 1
        %s283 = scalar_lea.sflag [#allocation7], %s282
        %s284 = sand.u32 %s60, 1
        %s285 = smul.addr %s284, 64
        %s286 = scalar_lea.vmem [#allocation6], %s285
        // Predicated region
        $region49: #{tpu_custom_call.1} parent=43 // pred_check
          %p287 = pneg %p73
        $region50: #{tpu_custom_call.1} parent=43 // pred_check_branch
          %289 = sbr.rel (%p287) target = $region52
        $region51: #{tpu_custom_call.1} parent=43 // pred_region
          %290 = dma.done %s283, 1024
        $region52: #{tpu_custom_call.1} parent=43 // pred_fallthru
          _
        // Predicated region
        $region53: #{tpu_custom_call.1} parent=43 // pred_check
          %p291 = pneg %p136
        $region54: #{tpu_custom_call.1} parent=43 // pred_check_branch
          %293 = sbr.rel (%p291) target = $region56
        $region55: #{tpu_custom_call.1} parent=43 // pred_region
          %294 = dma.done [#allocation7], 4608
        $region56: #{tpu_custom_call.1} parent=43 // pred_fallthru
          _
        %s295 = sand.u32 %s34, 1
        %s296 = scalar_lea.sflag [#allocation4], %s295
        %s297 = sand.u32 %s34, 1
        %s298 = smul.addr %s297, 32
        %s299 = scalar_lea.vmem [#allocation3], %s298
        %p300 = pneg %p47
        %p301 = pneg %p44
        %s302 = sand.u32 %s26, 1
        %s303 = scalar_lea.sflag [#allocation7], %s302
        %s304 = sand.u32 %s60, 1
        %s305 = smul.addr %s304, 64
        %s306 = scalar_lea.vmem [#allocation6], %s305
        %p307 = pneg %p73
        %p308 = pneg %p70
        %p309 = pneg %p94
        %p310 = pneg %p91
        %p311 = pneg %p115
        %p312 = pneg %p112
        %p313 = pneg %p136
        %p314 = pneg %p133
        %p315 = pneg %p157
        %p316 = pneg %p154
        %p317 = pneg %p183
        %p318 = pneg %p180
        %s319 = sand.u32 %s170, 1
        %s320 = scalar_lea.sflag [#allocation5], %s319
        %s321 = sand.u32 %s170, 1
        %s322 = smul.addr %s321, 64
        %s323 = scalar_lea.vmem [#allocation9], %s322
        %v325 = vld [vmem:[%s277] sm:$0xf]
        %v326 = vld [vmem:[%s277 + $0x4] sm:$0xf]
        %v327 = vld [vmem:[%s277 + $0x8] sm:$0xf]
        %v328 = vld [vmem:[%s277 + $0xc] sm:$0xf]
        %v329 = vld [vmem:[%s277 + $0x10] sm:$0xf]
        %v330 = vld [vmem:[%s277 + $0x14] sm:$0xf]
        %v331 = vld [vmem:[%s277 + $0x18] sm:$0xf]
        %v332 = vld [vmem:[%s277 + $0x1c] sm:$0xf]
        %v333 = vld [vmem:[%s2] sm:$0xf]
        %v334 = vld [vmem:[%s2 + $0x4] sm:$0xf]
        %v335 = vld [vmem:[%s2 + $0x8] sm:$0xf]
        %v336 = vld [vmem:[%s2 + $0xc] sm:$0xf]
        %v337 = vld [vmem:[%s2 + $0x10] sm:$0x3]
        %v338 = vld [vmem:[%s3] sm:$0x1]
        %v340 = vlaneseq
        %v341 = vshrl.u32 %v340, 7
        %v342 = vsub.s32 0, %v341
        %v343 = vrot.slane %v338, %v342
        %v353 = vunpack.c.l.b16 %v325
        %v354 = vunpack.c.l.b16 %v326
        %v355 = vunpack.c.l.b16 %v327
        %v356 = vunpack.c.l.b16 %v328
        %v357 = vunpack.c.l.b16 %v329
        %v358 = vunpack.c.l.b16 %v330
        %v359 = vunpack.c.l.b16 %v331
        %v360 = vunpack.c.l.b16 %v332
        %v361 = vpack.c.b16 %v354, %v353
        %v362 = vpack.c.b16 %v356, %v355
        %v363 = vpack.c.b16 %v358, %v357
        %v364 = vpack.c.b16 %v360, %v359
        %v370 = vunpack.c.l.b16 %v333
        %v371 = vunpack.c.l.b16 %v334
        %v372 = vunpack.c.l.b16 %v335
        %v373 = vunpack.c.l.b16 %v336
        %v374 = vunpack.c.l.b16 %v337
        %v375 = vpack.c.b16 %v371, %v370
        %v376 = vpack.c.b16 %v373, %v372
        %v377 = vpack.c.b16 %v374, %v374
        %vm380 = vcmask 293888
        %v382 = vsel %vm380, %v361, 0
        %v385 = vsel %vm380, %v362, 0
        %v388 = vsel %vm380, %v363, 0
        %v391 = vsel %vm380, %v364, 0
        %vm393 = vcmask 1041408
        %v395 = vsel %vm393, %v377, 0
        %397 = vmatprep.subr.bf16.mxu0 0
        %398 = vmatpush1.bf16.msra.mxu0 0
        %399 = vmatprep.subr.bf16.mxu0 0
        %400 = vmatpush1.bf16.msra.mxu0 0
        %401 = vmatprep.subr.bf16.mxu0 0
        %402 = vmatpush1.bf16.msra.mxu0 0
        %403 = vmatprep.subr.bf16.mxu0 0
        %404 = vmatpush1.bf16.msra.mxu0 0
        %405 = vmatprep.subr.bf16.mxu0 0
        %406 = vmatpush1.bf16.msra.mxu0 0
        %407 = vmatprep.subr.bf16.mxu0 0
        %408 = vmatpush1.bf16.msra.mxu0 %v395
        %409 = vmatprep.subr.bf16.mxu0 0
        %410 = vmatpush1.bf16.msra.mxu0 %v376
        %411 = vmatprep.subr.bf16.mxu0 0
        %412 = vmatpush1.bf16.msra.mxu0 %v375
        %413 = vmatprep.subr.bf16.mxu0 0
        %414 = vmatpush2.bf16.msra.mxu0 0
        %415 = vmatprep.subr.bf16.mxu0 0
        %416 = vmatpush2.bf16.msra.mxu0 0
        %417 = vmatprep.subr.bf16.mxu0 0
        %418 = vmatpush2.bf16.msra.mxu0 0
        %419 = vmatprep.subr.bf16.mxu0 0
        %420 = vmatpush2.bf16.msra.mxu0 0
        %421 = vmatprep.subr.bf16.mxu0 0
        %422 = vmatpush2.bf16.msra.mxu0 0
        %423 = vmatprep.subr.bf16.mxu0 0
        %424 = vmatpush2.bf16.msra.mxu0 0
        %425 = vmatprep.subr.bf16.mxu0 0
        %426 = vmatpush2.bf16.msra.mxu0 0
        %427 = vmatprep.subr.bf16.mxu0 0
        %428 = vmatpush2.bf16.msra.mxu0 0
        %429 = vmatprep.mubr.bf16.mxu0 0
        %430 = vmatmul.mubr.bf16.gmra.mxu0 %v382
        %v431 = vpop.f32.mrf.mxu0
        %v432 = vadd.f32 %v343, %v431
        %v433 = vpop.f32.mrf.mxu0
        %v434 = vpop.f32.mrf.mxu0
        %v435 = vadd.f32 %v343, %v434
        %v436 = vpop.f32.mrf.mxu0
        %437 = vmatprep.mubr.bf16.mxu0 0
        %438 = vmatmul.mubr.bf16.gmra.mxu0 %v385
        %v439 = vpop.f32.mrf.mxu0
        %v440 = vadd.f32 %v343, %v439
        %v441 = vpop.f32.mrf.mxu0
        %v442 = vpop.f32.mrf.mxu0
        %v443 = vadd.f32 %v343, %v442
        %v444 = vpop.f32.mrf.mxu0
        %445 = vmatprep.mubr.bf16.mxu0 0
        %446 = vmatmul.mubr.bf16.gmra.mxu0 %v388
        %v447 = vpop.f32.mrf.mxu0
        %v448 = vadd.f32 %v343, %v447
        %v449 = vpop.f32.mrf.mxu0
        %v450 = vpop.f32.mrf.mxu0
        %v451 = vadd.f32 %v343, %v450
        %v452 = vpop.f32.mrf.mxu0
        %453 = vmatprep.mubr.bf16.mxu0 0
        %454 = vmatmul.mubr.bf16.gmra.mxu0 %v391
        %v455 = vpop.f32.mrf.mxu0
        %v456 = vadd.f32 %v343, %v455
        %v457 = vpop.f32.mrf.mxu0
        %v458 = vpop.f32.mrf.mxu0
        %v459 = vadd.f32 %v343, %v458
        %v460 = vpop.f32.mrf.mxu0
        %461 = vdwg.mxu0
        %v462 = vld [vmem:[%s286] sm:$0xff]
        %v463 = vld [vmem:[%s286 + $0x8] sm:$0xff]
        %v464 = vld [vmem:[%s286 + $0x10] sm:$0xff]
        %v465 = vld [vmem:[%s286 + $0x18] sm:$0xff]
        %v466 = vld [vmem:[%s286 + $0x20] sm:$0xff]
        %v467 = vld [vmem:[%s286 + $0x28] sm:$0xff]
        %v468 = vld [vmem:[%s286 + $0x30] sm:$0xff]
        %v469 = vld [vmem:[%s286 + $0x38] sm:$0xff]
        %vm470 = vcmask 523264
        %471 = vst.msk [vmem:[#allocation2] sm:$0xff] %vm470, 0.0
        %472 = vst.msk [vmem:[#allocation2 + $0x8] sm:$0xff] %vm470, 0.0
        %473 = vst.msk [vmem:[#allocation2 + $0x10] sm:$0xff] %vm470, 0.0
        %474 = vst.msk [vmem:[#allocation2 + $0x18] sm:$0xff] %vm470, 0.0
        %475 = vst.msk [vmem:[#allocation2 + $0x20] sm:$0xff] %vm470, 0.0
        %476 = vst.msk [vmem:[#allocation2 + $0x28] sm:$0xff] %vm470, 0.0
        %477 = vst.msk [vmem:[#allocation2 + $0x30] sm:$0xff] %vm470, 0.0
        %478 = vst.msk [vmem:[#allocation2 + $0x38] sm:$0xff] %vm470, 0.0
        %479 = vst.msk [vmem:[#allocation2 + $0x40] sm:$0xff] %vm470, 0.0
        %480 = vst.msk [vmem:[#allocation2 + $0x48] sm:$0xff] %vm470, 0.0
        %481 = vst.msk [vmem:[#allocation2 + $0x50] sm:$0xff] %vm470, 0.0
        %482 = vst.msk [vmem:[#allocation2 + $0x58] sm:$0xff] %vm470, 0.0
        %483 = vst.msk [vmem:[#allocation2 + $0x60] sm:$0xff] %vm470, 0.0
        %484 = vst.msk [vmem:[#allocation2 + $0x68] sm:$0xff] %vm470, 0.0
        %485 = vst.msk [vmem:[#allocation2 + $0x70] sm:$0xff] %vm470, 0.0
        %486 = vst.msk [vmem:[#allocation2 + $0x78] sm:$0xff] %vm470, 0.0
        %487 = vst.msk [vmem:[#allocation2 + $0x80] sm:$0xff] %vm470, 0.0
        %488 = vst.msk [vmem:[#allocation2 + $0x88] sm:$0xff] %vm470, 0.0
        %489 = vst.msk [vmem:[#allocation2 + $0x90] sm:$0xff] %vm470, 0.0
        %490 = vst.msk [vmem:[#allocation2 + $0x98] sm:$0xff] %vm470, 0.0
        %499 = vrot.lane.b32.xlu0 %v462, 32
        %v500 = vpop.permute.xlu0 %499
        %501 = vrot.lane.b32.xlu0 %v463, 32
        %v502 = vpop.permute.xlu0 %501
        %503 = vrot.lane.b32.xlu0 %v464, 32
        %v504 = vpop.permute.xlu0 %503
        %505 = vrot.lane.b32.xlu0 %v465, 32
        %v506 = vpop.permute.xlu0 %505
        %507 = vrot.lane.b32.xlu0 %v466, 32
        %v508 = vpop.permute.xlu0 %507
        %509 = vrot.lane.b32.xlu0 %v467, 32
        %v510 = vpop.permute.xlu0 %509
        %511 = vrot.lane.b32.xlu0 %v468, 32
        %v512 = vpop.permute.xlu0 %511
        %513 = vrot.lane.b32.xlu0 %v469, 32
        %v514 = vpop.permute.xlu0 %513
        %vm523 = vcmask 261120
        %v524 = vsel %vm523, %v432, %v500
        %v525 = vsel %vm523, %v435, %v502
        %v526 = vsel %vm523, %v440, %v504
        %v527 = vsel %vm523, %v443, %v506
        %v528 = vsel %vm523, %v448, %v508
        %v529 = vsel %vm523, %v451, %v510
        %v530 = vsel %vm523, %v456, %v512
        %v531 = vsel %vm523, %v459, %v514
        %s532 = scalar_lea.vmem [#allocation2], 16
        %533 = vst.msk [vmem:[%s532 + $0x1] sm:$0xff] %vm470, %v524
        %534 = vst.msk [vmem:[%s532 + $0x11] sm:$0xff] %vm470, %v525
        %535 = vst.msk [vmem:[%s532 + $0x21] sm:$0xff] %vm470, %v526
        %536 = vst.msk [vmem:[%s532 + $0x31] sm:$0xff] %vm470, %v527
        %537 = vst.msk [vmem:[%s532 + $0x41] sm:$0xff] %vm470, %v528
        %538 = vst.msk [vmem:[%s532 + $0x51] sm:$0xff] %vm470, %v529
        %539 = vst.msk [vmem:[%s532 + $0x61] sm:$0xff] %vm470, %v530
        %540 = vst.msk [vmem:[%s532 + $0x71] sm:$0xff] %vm470, %v531
        %v541 = vld [vmem:[#allocation2] sm:$0xff]
        %v542 = vld [vmem:[#allocation2 + $0x8] sm:$0xff]
        %v543 = vld [vmem:[#allocation2 + $0x10] sm:$0xff]
        %v544 = vld [vmem:[#allocation2 + $0x18] sm:$0xff]
        %v545 = vld [vmem:[#allocation2 + $0x20] sm:$0xff]
        %v546 = vld [vmem:[#allocation2 + $0x28] sm:$0xff]
        %v547 = vld [vmem:[#allocation2 + $0x30] sm:$0xff]
        %v548 = vld [vmem:[#allocation2 + $0x38] sm:$0xff]
        %v549 = vld [vmem:[#allocation2 + $0x40] sm:$0xff]
        %v550 = vld [vmem:[#allocation2 + $0x48] sm:$0xff]
        %v551 = vld [vmem:[#allocation2 + $0x50] sm:$0xff]
        %v552 = vld [vmem:[#allocation2 + $0x58] sm:$0xff]
        %v553 = vld [vmem:[#allocation2 + $0x60] sm:$0xff]
        %v554 = vld [vmem:[#allocation2 + $0x68] sm:$0xff]
        %v555 = vld [vmem:[#allocation2 + $0x70] sm:$0xff]
        %v556 = vld [vmem:[#allocation2 + $0x78] sm:$0xff]
        %v557 = vpack.c.bf16 %v542, %v541
        %v558 = vpack.c.bf16 %v544, %v543
        %v559 = vpack.c.bf16 %v546, %v545
        %v560 = vpack.c.bf16 %v548, %v547
        %v561 = vpack.c.bf16 %v550, %v549
        %v562 = vpack.c.bf16 %v552, %v551
        %v563 = vpack.c.bf16 %v554, %v553
        %v564 = vpack.c.bf16 %v556, %v555
        %v565 = vld [vmem:[#allocation8] sm:$0xf]
        %v566 = vld [vmem:[#allocation8 + $0x4] sm:$0xf]
        %v567 = vld [vmem:[#allocation8 + $0x8] sm:$0xf]
        %v568 = vld [vmem:[#allocation8 + $0xc] sm:$0xf]
        %v569 = vld [vmem:[#allocation8 + $0x10] sm:$0xf]
        %v570 = vld [vmem:[#allocation8 + $0x14] sm:$0xf]
        %v571 = vld [vmem:[#allocation8 + $0x18] sm:$0xf]
        %v572 = vld [vmem:[#allocation8 + $0x1c] sm:$0xf]
        %s573 = scalar_lea.vmem [#allocation8], 32
        %v574 = vld [vmem:[%s573] sm:$0xf]
        %v575 = vld [vmem:[%s573 + $0x4] sm:$0xf]
        %v576 = vld [vmem:[%s573 + $0x8] sm:$0xf]
        %v577 = vld [vmem:[%s573 + $0xc] sm:$0xf]
        %v578 = vld [vmem:[%s573 + $0x10] sm:$0xf]
        %v579 = vld [vmem:[%s573 + $0x14] sm:$0xf]
        %v580 = vld [vmem:[%s573 + $0x18] sm:$0xf]
        %v581 = vld [vmem:[%s573 + $0x1c] sm:$0xf]
        %s582 = scalar_lea.vmem [#allocation8], 64
        %v583 = vld [vmem:[%s582] sm:$0xf]
        %v584 = vld [vmem:[%s582 + $0x4] sm:$0xf]
        %v585 = vld [vmem:[%s582 + $0x8] sm:$0xf]
        %v586 = vld [vmem:[%s582 + $0xc] sm:$0xf]
        %v587 = vld [vmem:[%s582 + $0x10] sm:$0xf]
        %v588 = vld [vmem:[%s582 + $0x14] sm:$0xf]
        %v589 = vld [vmem:[%s582 + $0x18] sm:$0xf]
        %v590 = vld [vmem:[%s582 + $0x1c] sm:$0xf]
        %v591 = vld [vmem:[%s532] sm:$0xff]
        %v592 = vld [vmem:[%s532 + $0x8] sm:$0xff]
        %v593 = vld [vmem:[%s532 + $0x10] sm:$0xff]
        %v594 = vld [vmem:[%s532 + $0x18] sm:$0xff]
        %v595 = vld [vmem:[%s532 + $0x20] sm:$0xff]
        %v596 = vld [vmem:[%s532 + $0x28] sm:$0xff]
        %v597 = vld [vmem:[%s532 + $0x30] sm:$0xff]
        %v598 = vld [vmem:[%s532 + $0x38] sm:$0xff]
        %v599 = vld [vmem:[%s532 + $0x40] sm:$0xff]
        %v600 = vld [vmem:[%s532 + $0x48] sm:$0xff]
        %v601 = vld [vmem:[%s532 + $0x50] sm:$0xff]
        %v602 = vld [vmem:[%s532 + $0x58] sm:$0xff]
        %v603 = vld [vmem:[%s532 + $0x60] sm:$0xff]
        %v604 = vld [vmem:[%s532 + $0x68] sm:$0xff]
        %v605 = vld [vmem:[%s532 + $0x70] sm:$0xff]
        %v606 = vld [vmem:[%s532 + $0x78] sm:$0xff]
        %v607 = vpack.c.bf16 %v592, %v591
        %v608 = vpack.c.bf16 %v594, %v593
        %v609 = vpack.c.bf16 %v596, %v595
        %v610 = vpack.c.bf16 %v598, %v597
        %v611 = vpack.c.bf16 %v600, %v599
        %v612 = vpack.c.bf16 %v602, %v601
        %v613 = vpack.c.bf16 %v604, %v603
        %v614 = vpack.c.bf16 %v606, %v605
        %s615 = scalar_lea.vmem [#allocation8], 96
        %v616 = vld [vmem:[%s615] sm:$0xf]
        %v617 = vld [vmem:[%s615 + $0x4] sm:$0xf]
        %v618 = vld [vmem:[%s615 + $0x8] sm:$0xf]
        %v619 = vld [vmem:[%s615 + $0xc] sm:$0xf]
        %v620 = vld [vmem:[%s615 + $0x10] sm:$0xf]
        %v621 = vld [vmem:[%s615 + $0x14] sm:$0xf]
        %v622 = vld [vmem:[%s615 + $0x18] sm:$0xf]
        %v623 = vld [vmem:[%s615 + $0x1c] sm:$0xf]
        %v632 = vunpack.c.l.b16 %v616
        %v633 = vunpack.c.l.b16 %v617
        %v634 = vunpack.c.l.b16 %v618
        %v635 = vunpack.c.l.b16 %v619
        %v636 = vunpack.c.l.b16 %v620
        %v637 = vunpack.c.l.b16 %v621
        %v638 = vunpack.c.l.b16 %v622
        %v639 = vunpack.c.l.b16 %v623
        %v640 = vpack.c.b16 %v633, %v632
        %v641 = vpack.c.b16 %v635, %v634
        %v642 = vpack.c.b16 %v637, %v636
        %v643 = vpack.c.b16 %v639, %v638
        %v649 = vsel %vm470, %v607, 0
        %v652 = vsel %vm470, %v608, 0
        %v655 = vsel %vm470, %v609, 0
        %v658 = vsel %vm470, %v610, 0
        %v661 = vsel %vm470, %v611, 0
        %v664 = vsel %vm470, %v612, 0
        %v667 = vsel %vm470, %v613, 0
        %v670 = vsel %vm470, %v614, 0
        %672 = vmatprep.subr.bf16.mxu0 0
        %673 = vmatpush1.bf16.msra.mxu0 0
        %674 = vmatprep.subr.bf16.mxu0 0
        %675 = vmatpush1.bf16.msra.mxu0 0
        %676 = vmatprep.subr.bf16.mxu0 0
        %677 = vmatpush1.bf16.msra.mxu0 0
        %678 = vmatprep.subr.bf16.mxu0 0
        %679 = vmatpush1.bf16.msra.mxu0 0
        %680 = vmatprep.subr.bf16.mxu0 0
        %681 = vmatpush1.bf16.msra.mxu0 %v643
        %682 = vmatprep.subr.bf16.mxu0 0
        %683 = vmatpush1.bf16.msra.mxu0 %v642
        %684 = vmatprep.subr.bf16.mxu0 0
        %685 = vmatpush1.bf16.msra.mxu0 %v641
        %686 = vmatprep.subr.bf16.mxu0 0
        %687 = vmatpush1.bf16.msra.mxu0 %v640
        %688 = vmatprep.subr.bf16.mxu0 0
        %689 = vmatpush2.bf16.msra.mxu0 0
        %690 = vmatprep.subr.bf16.mxu0 0
        %691 = vmatpush2.bf16.msra.mxu0 0
        %692 = vmatprep.subr.bf16.mxu0 0
        %693 = vmatpush2.bf16.msra.mxu0 0
        %694 = vmatprep.subr.bf16.mxu0 0
        %695 = vmatpush2.bf16.msra.mxu0 0
        %696 = vmatprep.subr.bf16.mxu0 0
        %697 = vmatpush2.bf16.msra.mxu0 0
        %698 = vmatprep.subr.bf16.mxu0 0
        %699 = vmatpush2.bf16.msra.mxu0 0
        %700 = vmatprep.subr.bf16.mxu0 0
        %701 = vmatpush2.bf16.msra.mxu0 0
        %702 = vmatprep.subr.bf16.mxu0 0
        %703 = vmatpush2.bf16.msra.mxu0 0
        %704 = vmatprep.mubr.bf16.mxu0 0
        %705 = vmatmul.mubr.bf16.gmra.mxu0 %v649
        %v706 = vpop.f32.mrf.mxu0
        %v707 = vadd.f32 0.0, %v706
        %v708 = vpop.f32.mrf.mxu0
        %v709 = vpop.f32.mrf.mxu0
        %v710 = vpop.f32.mrf.mxu0
        %711 = vmatprep.mubr.bf16.mxu0 0
        %712 = vmatmul.mubr.bf16.gmra.mxu0 %v652
        %v713 = vpop.f32.mrf.mxu0
        %v714 = vadd.f32 0.0, %v713
        %v715 = vpop.f32.mrf.mxu0
        %v716 = vpop.f32.mrf.mxu0
        %v717 = vpop.f32.mrf.mxu0
        %718 = vmatprep.mubr.bf16.mxu0 0
        %719 = vmatmul.mubr.bf16.gmra.mxu0 %v655
        %v720 = vpop.f32.mrf.mxu0
        %v721 = vadd.f32 0.0, %v720
        %v722 = vpop.f32.mrf.mxu0
        %v723 = vpop.f32.mrf.mxu0
        %v724 = vpop.f32.mrf.mxu0
        %725 = vmatprep.mubr.bf16.mxu0 0
        %726 = vmatmul.mubr.bf16.gmra.mxu0 %v658
        %v727 = vpop.f32.mrf.mxu0
        %v728 = vadd.f32 0.0, %v727
        %v729 = vpop.f32.mrf.mxu0
        %v730 = vpop.f32.mrf.mxu0
        %v731 = vpop.f32.mrf.mxu0
        %732 = vmatprep.mubr.bf16.mxu0 0
        %733 = vmatmul.mubr.bf16.gmra.mxu0 %v661
        %v734 = vpop.f32.mrf.mxu0
        %v735 = vadd.f32 0.0, %v734
        %v736 = vpop.f32.mrf.mxu0
        %v737 = vpop.f32.mrf.mxu0
        %v738 = vpop.f32.mrf.mxu0
        %739 = vmatprep.mubr.bf16.mxu0 0
        %740 = vmatmul.mubr.bf16.gmra.mxu0 %v664
        %v741 = vpop.f32.mrf.mxu0
        %v742 = vadd.f32 0.0, %v741
        %v743 = vpop.f32.mrf.mxu0
        %v744 = vpop.f32.mrf.mxu0
        %v745 = vpop.f32.mrf.mxu0
        %746 = vmatprep.mubr.bf16.mxu0 0
        %747 = vmatmul.mubr.bf16.gmra.mxu0 %v667
        %v748 = vpop.f32.mrf.mxu0
        %v749 = vadd.f32 0.0, %v748
        %v750 = vpop.f32.mrf.mxu0
        %v751 = vpop.f32.mrf.mxu0
        %v752 = vpop.f32.mrf.mxu0
        %753 = vmatprep.mubr.bf16.mxu0 0
        %754 = vmatmul.mubr.bf16.gmra.mxu0 %v670
        %v755 = vpop.f32.mrf.mxu0
        %v756 = vadd.f32 0.0, %v755
        %v757 = vpop.f32.mrf.mxu0
        %v758 = vpop.f32.mrf.mxu0
        %v759 = vpop.f32.mrf.mxu0
        %760 = vdwg.mxu0
        %v769 = vunpack.c.l.b16 %v565
        %v770 = vunpack.c.l.b16 %v566
        %v771 = vunpack.c.l.b16 %v567
        %v772 = vunpack.c.l.b16 %v568
        %v773 = vunpack.c.l.b16 %v569
        %v774 = vunpack.c.l.b16 %v570
        %v775 = vunpack.c.l.b16 %v571
        %v776 = vunpack.c.l.b16 %v572
        %v777 = vpack.c.b16 %v770, %v769
        %v778 = vpack.c.b16 %v772, %v771
        %v779 = vpack.c.b16 %v774, %v773
        %v780 = vpack.c.b16 %v776, %v775
        %v786 = vsel %vm470, %v557, 0
        %v789 = vsel %vm470, %v558, 0
        %v792 = vsel %vm470, %v559, 0
        %v795 = vsel %vm470, %v560, 0
        %v798 = vsel %vm470, %v561, 0
        %v801 = vsel %vm470, %v562, 0
        %v804 = vsel %vm470, %v563, 0
        %v807 = vsel %vm470, %v564, 0
        %809 = vmatprep.subr.bf16.mxu0 0
        %810 = vmatpush1.bf16.msra.mxu0 0
        %811 = vmatprep.subr.bf16.mxu0 0
        %812 = vmatpush1.bf16.msra.mxu0 0
        %813 = vmatprep.subr.bf16.mxu0 0
        %814 = vmatpush1.bf16.msra.mxu0 0
        %815 = vmatprep.subr.bf16.mxu0 0
        %816 = vmatpush1.bf16.msra.mxu0 0
        %817 = vmatprep.subr.bf16.mxu0 0
        %818 = vmatpush1.bf16.msra.mxu0 %v780
        %819 = vmatprep.subr.bf16.mxu0 0
        %820 = vmatpush1.bf16.msra.mxu0 %v779
        %821 = vmatprep.subr.bf16.mxu0 0
        %822 = vmatpush1.bf16.msra.mxu0 %v778
        %823 = vmatprep.subr.bf16.mxu0 0
        %824 = vmatpush1.bf16.msra.mxu0 %v777
        %825 = vmatprep.subr.bf16.mxu0 0
        %826 = vmatpush2.bf16.msra.mxu0 0
        %827 = vmatprep.subr.bf16.mxu0 0
        %828 = vmatpush2.bf16.msra.mxu0 0
        %829 = vmatprep.subr.bf16.mxu0 0
        %830 = vmatpush2.bf16.msra.mxu0 0
        %831 = vmatprep.subr.bf16.mxu0 0
        %832 = vmatpush2.bf16.msra.mxu0 0
        %833 = vmatprep.subr.bf16.mxu0 0
        %834 = vmatpush2.bf16.msra.mxu0 0
        %835 = vmatprep.subr.bf16.mxu0 0
        %836 = vmatpush2.bf16.msra.mxu0 0
        %837 = vmatprep.subr.bf16.mxu0 0
        %838 = vmatpush2.bf16.msra.mxu0 0
        %839 = vmatprep.subr.bf16.mxu0 0
        %840 = vmatpush2.bf16.msra.mxu0 0
        %841 = vmatprep.mubr.bf16.mxu0 0
        %842 = vmatmul.mubr.bf16.gmra.mxu0 %v786
        %v843 = vpop.f32.mrf.mxu0
        %v844 = vadd.f32 %v707, %v843
        %v845 = vpop.f32.mrf.mxu0
        %v846 = vpop.f32.mrf.mxu0
        %v847 = vpop.f32.mrf.mxu0
        %848 = vmatprep.mubr.bf16.mxu0 0
        %849 = vmatmul.mubr.bf16.gmra.mxu0 %v789
        %v850 = vpop.f32.mrf.mxu0
        %v851 = vadd.f32 %v714, %v850
        %v852 = vpop.f32.mrf.mxu0
        %v853 = vpop.f32.mrf.mxu0
        %v854 = vpop.f32.mrf.mxu0
        %855 = vmatprep.mubr.bf16.mxu0 0
        %856 = vmatmul.mubr.bf16.gmra.mxu0 %v792
        %v857 = vpop.f32.mrf.mxu0
        %v858 = vadd.f32 %v721, %v857
        %v859 = vpop.f32.mrf.mxu0
        %v860 = vpop.f32.mrf.mxu0
        %v861 = vpop.f32.mrf.mxu0
        %862 = vmatprep.mubr.bf16.mxu0 0
        %863 = vmatmul.mubr.bf16.gmra.mxu0 %v795
        %v864 = vpop.f32.mrf.mxu0
        %v865 = vadd.f32 %v728, %v864
        %v866 = vpop.f32.mrf.mxu0
        %v867 = vpop.f32.mrf.mxu0
        %v868 = vpop.f32.mrf.mxu0
        %869 = vmatprep.mubr.bf16.mxu0 0
        %870 = vmatmul.mubr.bf16.gmra.mxu0 %v798
        %v871 = vpop.f32.mrf.mxu0
        %v872 = vadd.f32 %v735, %v871
        %v873 = vpop.f32.mrf.mxu0
        %v874 = vpop.f32.mrf.mxu0
        %v875 = vpop.f32.mrf.mxu0
        %876 = vmatprep.mubr.bf16.mxu0 0
        %877 = vmatmul.mubr.bf16.gmra.mxu0 %v801
        %v878 = vpop.f32.mrf.mxu0
        %v879 = vadd.f32 %v742, %v878
        %v880 = vpop.f32.mrf.mxu0
        %v881 = vpop.f32.mrf.mxu0
        %v882 = vpop.f32.mrf.mxu0
        %883 = vmatprep.mubr.bf16.mxu0 0
        %884 = vmatmul.mubr.bf16.gmra.mxu0 %v804
        %v885 = vpop.f32.mrf.mxu0
        %v886 = vadd.f32 %v749, %v885
        %v887 = vpop.f32.mrf.mxu0
        %v888 = vpop.f32.mrf.mxu0
        %v889 = vpop.f32.mrf.mxu0
        %890 = vmatprep.mubr.bf16.mxu0 0
        %891 = vmatmul.mubr.bf16.gmra.mxu0 %v807
        %v892 = vpop.f32.mrf.mxu0
        %v893 = vadd.f32 %v756, %v892
        %v894 = vpop.f32.mrf.mxu0
        %v895 = vpop.f32.mrf.mxu0
        %v896 = vpop.f32.mrf.mxu0
        %897 = vdwg.mxu0
        %s898 = scalar_lea.vmem [#allocation8], 128
        %v899 = vld [vmem:[%s898] sm:$0xf]
        %v900 = vld [vmem:[%s898 + $0x4] sm:$0xf]
        %v901 = vld [vmem:[%s898 + $0x8] sm:$0xf]
        %v902 = vld [vmem:[%s898 + $0xc] sm:$0xf]
        %v903 = vld [vmem:[%s898 + $0x10] sm:$0xf]
        %v904 = vld [vmem:[%s898 + $0x14] sm:$0xf]
        %v905 = vld [vmem:[%s898 + $0x18] sm:$0xf]
        %v906 = vld [vmem:[%s898 + $0x1c] sm:$0xf]
        %v915 = vunpack.c.l.b16 %v899
        %v916 = vunpack.c.l.b16 %v900
        %v917 = vunpack.c.l.b16 %v901
        %v918 = vunpack.c.l.b16 %v902
        %v919 = vunpack.c.l.b16 %v903
        %v920 = vunpack.c.l.b16 %v904
        %v921 = vunpack.c.l.b16 %v905
        %v922 = vunpack.c.l.b16 %v906
        %v923 = vpack.c.b16 %v916, %v915
        %v924 = vpack.c.b16 %v918, %v917
        %v925 = vpack.c.b16 %v920, %v919
        %v926 = vpack.c.b16 %v922, %v921
        %931 = vmatprep.subr.bf16.mxu0 0
        %932 = vmatpush1.bf16.msra.mxu0 0
        %933 = vmatprep.subr.bf16.mxu0 0
        %934 = vmatpush1.bf16.msra.mxu0 0
        %935 = vmatprep.subr.bf16.mxu0 0
        %936 = vmatpush1.bf16.msra.mxu0 0
        %937 = vmatprep.subr.bf16.mxu0 0
        %938 = vmatpush1.bf16.msra.mxu0 0
        %939 = vmatprep.subr.bf16.mxu0 0
        %940 = vmatpush1.bf16.msra.mxu0 %v926
        %941 = vmatprep.subr.bf16.mxu0 0
        %942 = vmatpush1.bf16.msra.mxu0 %v925
        %943 = vmatprep.subr.bf16.mxu0 0
        %944 = vmatpush1.bf16.msra.mxu0 %v924
        %945 = vmatprep.subr.bf16.mxu0 0
        %946 = vmatpush1.bf16.msra.mxu0 %v923
        %947 = vmatprep.subr.bf16.mxu0 0
        %948 = vmatpush2.bf16.msra.mxu0 0
        %949 = vmatprep.subr.bf16.mxu0 0
        %950 = vmatpush2.bf16.msra.mxu0 0
        %951 = vmatprep.subr.bf16.mxu0 0
        %952 = vmatpush2.bf16.msra.mxu0 0
        %953 = vmatprep.subr.bf16.mxu0 0
        %954 = vmatpush2.bf16.msra.mxu0 0
        %955 = vmatprep.subr.bf16.mxu0 0
        %956 = vmatpush2.bf16.msra.mxu0 0
        %957 = vmatprep.subr.bf16.mxu0 0
        %958 = vmatpush2.bf16.msra.mxu0 0
        %959 = vmatprep.subr.bf16.mxu0 0
        %960 = vmatpush2.bf16.msra.mxu0 0
        %961 = vmatprep.subr.bf16.mxu0 0
        %962 = vmatpush2.bf16.msra.mxu0 0
        %963 = vmatprep.mubr.bf16.mxu0 0
        %964 = vmatmul.mubr.bf16.gmra.mxu0 %v649
        %v965 = vpop.f32.mrf.mxu0
        %v966 = vadd.f32 0.0, %v965
        %v967 = vpop.f32.mrf.mxu0
        %v968 = vpop.f32.mrf.mxu0
        %v969 = vadd.f32 0.0, %v968
        %v970 = vpop.f32.mrf.mxu0
        %971 = vmatprep.mubr.bf16.mxu0 0
        %972 = vmatmul.mubr.bf16.gmra.mxu0 %v652
        %v973 = vpop.f32.mrf.mxu0
        %v974 = vadd.f32 0.0, %v973
        %v975 = vpop.f32.mrf.mxu0
        %v976 = vpop.f32.mrf.mxu0
        %v977 = vadd.f32 0.0, %v976
        %v978 = vpop.f32.mrf.mxu0
        %979 = vmatprep.mubr.bf16.mxu0 0
        %980 = vmatmul.mubr.bf16.gmra.mxu0 %v655
        %v981 = vpop.f32.mrf.mxu0
        %v982 = vadd.f32 0.0, %v981
        %v983 = vpop.f32.mrf.mxu0
        %v984 = vpop.f32.mrf.mxu0
        %v985 = vadd.f32 0.0, %v984
        %v986 = vpop.f32.mrf.mxu0
        %987 = vmatprep.mubr.bf16.mxu0 0
        %988 = vmatmul.mubr.bf16.gmra.mxu0 %v658
        %v989 = vpop.f32.mrf.mxu0
        %v990 = vadd.f32 0.0, %v989
        %v991 = vpop.f32.mrf.mxu0
        %v992 = vpop.f32.mrf.mxu0
        %v993 = vadd.f32 0.0, %v992
        %v994 = vpop.f32.mrf.mxu0
        %995 = vmatprep.mubr.bf16.mxu0 0
        %996 = vmatmul.mubr.bf16.gmra.mxu0 %v661
        %v997 = vpop.f32.mrf.mxu0
        %v998 = vadd.f32 0.0, %v997
        %v999 = vpop.f32.mrf.mxu0
        %v1000 = vpop.f32.mrf.mxu0
        %v1001 = vadd.f32 0.0, %v1000
        %v1002 = vpop.f32.mrf.mxu0
        %1003 = vmatprep.mubr.bf16.mxu0 0
        %1004 = vmatmul.mubr.bf16.gmra.mxu0 %v664
        %v1005 = vpop.f32.mrf.mxu0
        %v1006 = vadd.f32 0.0, %v1005
        %v1007 = vpop.f32.mrf.mxu0
        %v1008 = vpop.f32.mrf.mxu0
        %v1009 = vadd.f32 0.0, %v1008
        %v1010 = vpop.f32.mrf.mxu0
        %1011 = vmatprep.mubr.bf16.mxu0 0
        %1012 = vmatmul.mubr.bf16.gmra.mxu0 %v667
        %v1013 = vpop.f32.mrf.mxu0
        %v1014 = vadd.f32 0.0, %v1013
        %v1015 = vpop.f32.mrf.mxu0
        %v1016 = vpop.f32.mrf.mxu0
        %v1017 = vadd.f32 0.0, %v1016
        %v1018 = vpop.f32.mrf.mxu0
        %1019 = vmatprep.mubr.bf16.mxu0 0
        %1020 = vmatmul.mubr.bf16.gmra.mxu0 %v670
        %v1021 = vpop.f32.mrf.mxu0
        %v1022 = vadd.f32 0.0, %v1021
        %v1023 = vpop.f32.mrf.mxu0
        %v1024 = vpop.f32.mrf.mxu0
        %v1025 = vadd.f32 0.0, %v1024
        %v1026 = vpop.f32.mrf.mxu0
        %1027 = vdwg.mxu0
        %v1036 = vunpack.c.l.b16 %v574
        %v1037 = vunpack.c.l.b16 %v575
        %v1038 = vunpack.c.l.b16 %v576
        %v1039 = vunpack.c.l.b16 %v577
        %v1040 = vunpack.c.l.b16 %v578
        %v1041 = vunpack.c.l.b16 %v579
        %v1042 = vunpack.c.l.b16 %v580
        %v1043 = vunpack.c.l.b16 %v581
        %v1044 = vpack.c.b16 %v1037, %v1036
        %v1045 = vpack.c.b16 %v1039, %v1038
        %v1046 = vpack.c.b16 %v1041, %v1040
        %v1047 = vpack.c.b16 %v1043, %v1042
        %1052 = vmatprep.subr.bf16.mxu0 0
        %1053 = vmatpush1.bf16.msra.mxu0 0
        %1054 = vmatprep.subr.bf16.mxu0 0
        %1055 = vmatpush1.bf16.msra.mxu0 0
        %1056 = vmatprep.subr.bf16.mxu0 0
        %1057 = vmatpush1.bf16.msra.mxu0 0
        %1058 = vmatprep.subr.bf16.mxu0 0
        %1059 = vmatpush1.bf16.msra.mxu0 0
        %1060 = vmatprep.subr.bf16.mxu0 0
        %1061 = vmatpush1.bf16.msra.mxu0 %v1047
        %1062 = vmatprep.subr.bf16.mxu0 0
        %1063 = vmatpush1.bf16.msra.mxu0 %v1046
        %1064 = vmatprep.subr.bf16.mxu0 0
        %1065 = vmatpush1.bf16.msra.mxu0 %v1045
        %1066 = vmatprep.subr.bf16.mxu0 0
        %1067 = vmatpush1.bf16.msra.mxu0 %v1044
        %1068 = vmatprep.subr.bf16.mxu0 0
        %1069 = vmatpush2.bf16.msra.mxu0 0
        %1070 = vmatprep.subr.bf16.mxu0 0
        %1071 = vmatpush2.bf16.msra.mxu0 0
        %1072 = vmatprep.subr.bf16.mxu0 0
        %1073 = vmatpush2.bf16.msra.mxu0 0
        %1074 = vmatprep.subr.bf16.mxu0 0
        %1075 = vmatpush2.bf16.msra.mxu0 0
        %1076 = vmatprep.subr.bf16.mxu0 0
        %1077 = vmatpush2.bf16.msra.mxu0 0
        %1078 = vmatprep.subr.bf16.mxu0 0
        %1079 = vmatpush2.bf16.msra.mxu0 0
        %1080 = vmatprep.subr.bf16.mxu0 0
        %1081 = vmatpush2.bf16.msra.mxu0 0
        %1082 = vmatprep.subr.bf16.mxu0 0
        %1083 = vmatpush2.bf16.msra.mxu0 0
        %1084 = vmatprep.mubr.bf16.mxu0 0
        %1085 = vmatmul.mubr.bf16.gmra.mxu0 %v786
        %v1086 = vpop.f32.mrf.mxu0
        %v1087 = vadd.f32 %v966, %v1086
        %v1088 = vpop.f32.mrf.mxu0
        %v1089 = vpop.f32.mrf.mxu0
        %v1090 = vadd.f32 %v969, %v1089
        %v1091 = vpop.f32.mrf.mxu0
        %1092 = vmatprep.mubr.bf16.mxu0 0
        %1093 = vmatmul.mubr.bf16.gmra.mxu0 %v789
        %v1094 = vpop.f32.mrf.mxu0
        %v1095 = vadd.f32 %v974, %v1094
        %v1096 = vpop.f32.mrf.mxu0
        %v1097 = vpop.f32.mrf.mxu0
        %v1098 = vadd.f32 %v977, %v1097
        %v1099 = vpop.f32.mrf.mxu0
        %1100 = vmatprep.mubr.bf16.mxu0 0
        %1101 = vmatmul.mubr.bf16.gmra.mxu0 %v792
        %v1102 = vpop.f32.mrf.mxu0
        %v1103 = vadd.f32 %v982, %v1102
        %v1104 = vpop.f32.mrf.mxu0
        %v1105 = vpop.f32.mrf.mxu0
        %v1106 = vadd.f32 %v985, %v1105
        %v1107 = vpop.f32.mrf.mxu0
        %1108 = vmatprep.mubr.bf16.mxu0 0
        %1109 = vmatmul.mubr.bf16.gmra.mxu0 %v795
        %v1110 = vpop.f32.mrf.mxu0
        %v1111 = vadd.f32 %v990, %v1110
        %v1112 = vpop.f32.mrf.mxu0
        %v1113 = vpop.f32.mrf.mxu0
        %v1114 = vadd.f32 %v993, %v1113
        %v1115 = vpop.f32.mrf.mxu0
        %1116 = vmatprep.mubr.bf16.mxu0 0
        %1117 = vmatmul.mubr.bf16.gmra.mxu0 %v798
        %v1118 = vpop.f32.mrf.mxu0
        %v1119 = vadd.f32 %v998, %v1118
        %v1120 = vpop.f32.mrf.mxu0
        %v1121 = vpop.f32.mrf.mxu0
        %v1122 = vadd.f32 %v1001, %v1121
        %v1123 = vpop.f32.mrf.mxu0
        %1124 = vmatprep.mubr.bf16.mxu0 0
        %1125 = vmatmul.mubr.bf16.gmra.mxu0 %v801
        %v1126 = vpop.f32.mrf.mxu0
        %v1127 = vadd.f32 %v1006, %v1126
        %v1128 = vpop.f32.mrf.mxu0
        %v1129 = vpop.f32.mrf.mxu0
        %v1130 = vadd.f32 %v1009, %v1129
        %v1131 = vpop.f32.mrf.mxu0
        %1132 = vmatprep.mubr.bf16.mxu0 0
        %1133 = vmatmul.mubr.bf16.gmra.mxu0 %v804
        %v1134 = vpop.f32.mrf.mxu0
        %v1135 = vadd.f32 %v1014, %v1134
        %v1136 = vpop.f32.mrf.mxu0
        %v1137 = vpop.f32.mrf.mxu0
        %v1138 = vadd.f32 %v1017, %v1137
        %v1139 = vpop.f32.mrf.mxu0
        %1140 = vmatprep.mubr.bf16.mxu0 0
        %1141 = vmatmul.mubr.bf16.gmra.mxu0 %v807
        %v1142 = vpop.f32.mrf.mxu0
        %v1143 = vadd.f32 %v1022, %v1142
        %v1144 = vpop.f32.mrf.mxu0
        %v1145 = vpop.f32.mrf.mxu0
        %v1146 = vadd.f32 %v1025, %v1145
        %v1147 = vpop.f32.mrf.mxu0
        %1148 = vdwg.mxu0
        %s1149 = scalar_lea.vmem [#allocation8], 160
        %v1150 = vld [vmem:[%s1149] sm:$0xf]
        %v1151 = vld [vmem:[%s1149 + $0x4] sm:$0xf]
        %v1152 = vld [vmem:[%s1149 + $0x8] sm:$0xf]
        %v1153 = vld [vmem:[%s1149 + $0xc] sm:$0xf]
        %v1154 = vld [vmem:[%s1149 + $0x10] sm:$0xf]
        %v1155 = vld [vmem:[%s1149 + $0x14] sm:$0xf]
        %v1156 = vld [vmem:[%s1149 + $0x18] sm:$0xf]
        %v1157 = vld [vmem:[%s1149 + $0x1c] sm:$0xf]
        %v1166 = vunpack.c.l.b16 %v1150
        %v1167 = vunpack.c.l.b16 %v1151
        %v1168 = vunpack.c.l.b16 %v1152
        %v1169 = vunpack.c.l.b16 %v1153
        %v1170 = vunpack.c.l.b16 %v1154
        %v1171 = vunpack.c.l.b16 %v1155
        %v1172 = vunpack.c.l.b16 %v1156
        %v1173 = vunpack.c.l.b16 %v1157
        %v1174 = vpack.c.b16 %v1167, %v1166
        %v1175 = vpack.c.b16 %v1169, %v1168
        %v1176 = vpack.c.b16 %v1171, %v1170
        %v1177 = vpack.c.b16 %v1173, %v1172
        %1182 = vmatprep.subr.bf16.mxu0 0
        %1183 = vmatpush1.bf16.msra.mxu0 0
        %1184 = vmatprep.subr.bf16.mxu0 0
        %1185 = vmatpush1.bf16.msra.mxu0 0
        %1186 = vmatprep.subr.bf16.mxu0 0
        %1187 = vmatpush1.bf16.msra.mxu0 0
        %1188 = vmatprep.subr.bf16.mxu0 0
        %1189 = vmatpush1.bf16.msra.mxu0 0
        %1190 = vmatprep.subr.bf16.mxu0 0
        %1191 = vmatpush1.bf16.msra.mxu0 %v1177
        %1192 = vmatprep.subr.bf16.mxu0 0
        %1193 = vmatpush1.bf16.msra.mxu0 %v1176
        %1194 = vmatprep.subr.bf16.mxu0 0
        %1195 = vmatpush1.bf16.msra.mxu0 %v1175
        %1196 = vmatprep.subr.bf16.mxu0 0
        %1197 = vmatpush1.bf16.msra.mxu0 %v1174
        %1198 = vmatprep.subr.bf16.mxu0 0
        %1199 = vmatpush2.bf16.msra.mxu0 0
        %1200 = vmatprep.subr.bf16.mxu0 0
        %1201 = vmatpush2.bf16.msra.mxu0 0
        %1202 = vmatprep.subr.bf16.mxu0 0
        %1203 = vmatpush2.bf16.msra.mxu0 0
        %1204 = vmatprep.subr.bf16.mxu0 0
        %1205 = vmatpush2.bf16.msra.mxu0 0
        %1206 = vmatprep.subr.bf16.mxu0 0
        %1207 = vmatpush2.bf16.msra.mxu0 0
        %1208 = vmatprep.subr.bf16.mxu0 0
        %1209 = vmatpush2.bf16.msra.mxu0 0
        %1210 = vmatprep.subr.bf16.mxu0 0
        %1211 = vmatpush2.bf16.msra.mxu0 0
        %1212 = vmatprep.subr.bf16.mxu0 0
        %1213 = vmatpush2.bf16.msra.mxu0 0
        %1214 = vmatprep.mubr.bf16.mxu0 0
        %1215 = vmatmul.mubr.bf16.gmra.mxu0 %v649
        %v1216 = vpop.f32.mrf.mxu0
        %v1217 = vadd.f32 0.0, %v1216
        %v1218 = vpop.f32.mrf.mxu0
        %v1219 = vpop.f32.mrf.mxu0
        %v1220 = vadd.f32 0.0, %v1219
        %v1221 = vpop.f32.mrf.mxu0
        %1222 = vmatprep.mubr.bf16.mxu0 0
        %1223 = vmatmul.mubr.bf16.gmra.mxu0 %v652
        %v1224 = vpop.f32.mrf.mxu0
        %v1225 = vadd.f32 0.0, %v1224
        %v1226 = vpop.f32.mrf.mxu0
        %v1227 = vpop.f32.mrf.mxu0
        %v1228 = vadd.f32 0.0, %v1227
        %v1229 = vpop.f32.mrf.mxu0
        %1230 = vmatprep.mubr.bf16.mxu0 0
        %1231 = vmatmul.mubr.bf16.gmra.mxu0 %v655
        %v1232 = vpop.f32.mrf.mxu0
        %v1233 = vadd.f32 0.0, %v1232
        %v1234 = vpop.f32.mrf.mxu0
        %v1235 = vpop.f32.mrf.mxu0
        %v1236 = vadd.f32 0.0, %v1235
        %v1237 = vpop.f32.mrf.mxu0
        %1238 = vmatprep.mubr.bf16.mxu0 0
        %1239 = vmatmul.mubr.bf16.gmra.mxu0 %v658
        %v1240 = vpop.f32.mrf.mxu0
        %v1241 = vadd.f32 0.0, %v1240
        %v1242 = vpop.f32.mrf.mxu0
        %v1243 = vpop.f32.mrf.mxu0
        %v1244 = vadd.f32 0.0, %v1243
        %v1245 = vpop.f32.mrf.mxu0
        %1246 = vmatprep.mubr.bf16.mxu0 0
        %1247 = vmatmul.mubr.bf16.gmra.mxu0 %v661
        %v1248 = vpop.f32.mrf.mxu0
        %v1249 = vadd.f32 0.0, %v1248
        %v1250 = vpop.f32.mrf.mxu0
        %v1251 = vpop.f32.mrf.mxu0
        %v1252 = vadd.f32 0.0, %v1251
        %v1253 = vpop.f32.mrf.mxu0
        %1254 = vmatprep.mubr.bf16.mxu0 0
        %1255 = vmatmul.mubr.bf16.gmra.mxu0 %v664
        %v1256 = vpop.f32.mrf.mxu0
        %v1257 = vadd.f32 0.0, %v1256
        %v1258 = vpop.f32.mrf.mxu0
        %v1259 = vpop.f32.mrf.mxu0
        %v1260 = vadd.f32 0.0, %v1259
        %v1261 = vpop.f32.mrf.mxu0
        %1262 = vmatprep.mubr.bf16.mxu0 0
        %1263 = vmatmul.mubr.bf16.gmra.mxu0 %v667
        %v1264 = vpop.f32.mrf.mxu0
        %v1265 = vadd.f32 0.0, %v1264
        %v1266 = vpop.f32.mrf.mxu0
        %v1267 = vpop.f32.mrf.mxu0
        %v1268 = vadd.f32 0.0, %v1267
        %v1269 = vpop.f32.mrf.mxu0
        %1270 = vmatprep.mubr.bf16.mxu0 0
        %1271 = vmatmul.mubr.bf16.gmra.mxu0 %v670
        %v1272 = vpop.f32.mrf.mxu0
        %v1273 = vadd.f32 0.0, %v1272
        %v1274 = vpop.f32.mrf.mxu0
        %v1275 = vpop.f32.mrf.mxu0
        %v1276 = vadd.f32 0.0, %v1275
        %v1277 = vpop.f32.mrf.mxu0
        %1278 = vdwg.mxu0
        %v1287 = vunpack.c.l.b16 %v583
        %v1288 = vunpack.c.l.b16 %v584
        %v1289 = vunpack.c.l.b16 %v585
        %v1290 = vunpack.c.l.b16 %v586
        %v1291 = vunpack.c.l.b16 %v587
        %v1292 = vunpack.c.l.b16 %v588
        %v1293 = vunpack.c.l.b16 %v589
        %v1294 = vunpack.c.l.b16 %v590
        %v1295 = vpack.c.b16 %v1288, %v1287
        %v1296 = vpack.c.b16 %v1290, %v1289
        %v1297 = vpack.c.b16 %v1292, %v1291
        %v1298 = vpack.c.b16 %v1294, %v1293
        %1303 = vmatprep.subr.bf16.mxu0 0
        %1304 = vmatpush1.bf16.msra.mxu0 0
        %1305 = vmatprep.subr.bf16.mxu0 0
        %1306 = vmatpush1.bf16.msra.mxu0 0
        %1307 = vmatprep.subr.bf16.mxu0 0
        %1308 = vmatpush1.bf16.msra.mxu0 0
        %1309 = vmatprep.subr.bf16.mxu0 0
        %1310 = vmatpush1.bf16.msra.mxu0 0
        %1311 = vmatprep.subr.bf16.mxu0 0
        %1312 = vmatpush1.bf16.msra.mxu0 %v1298
        %1313 = vmatprep.subr.bf16.mxu0 0
        %1314 = vmatpush1.bf16.msra.mxu0 %v1297
        %1315 = vmatprep.subr.bf16.mxu0 0
        %1316 = vmatpush1.bf16.msra.mxu0 %v1296
        %1317 = vmatprep.subr.bf16.mxu0 0
        %1318 = vmatpush1.bf16.msra.mxu0 %v1295
        %1319 = vmatprep.subr.bf16.mxu0 0
        %1320 = vmatpush2.bf16.msra.mxu0 0
        %1321 = vmatprep.subr.bf16.mxu0 0
        %1322 = vmatpush2.bf16.msra.mxu0 0
        %1323 = vmatprep.subr.bf16.mxu0 0
        %1324 = vmatpush2.bf16.msra.mxu0 0
        %1325 = vmatprep.subr.bf16.mxu0 0
        %1326 = vmatpush2.bf16.msra.mxu0 0
        %1327 = vmatprep.subr.bf16.mxu0 0
        %1328 = vmatpush2.bf16.msra.mxu0 0
        %1329 = vmatprep.subr.bf16.mxu0 0
        %1330 = vmatpush2.bf16.msra.mxu0 0
        %1331 = vmatprep.subr.bf16.mxu0 0
        %1332 = vmatpush2.bf16.msra.mxu0 0
        %1333 = vmatprep.subr.bf16.mxu0 0
        %1334 = vmatpush2.bf16.msra.mxu0 0
        %1335 = vmatprep.mubr.bf16.mxu0 0
        %1336 = vmatmul.mubr.bf16.gmra.mxu0 %v786
        %v1337 = vpop.f32.mrf.mxu0
        %v1338 = vadd.f32 %v1217, %v1337
        %v1339 = vpop.f32.mrf.mxu0
        %v1340 = vpop.f32.mrf.mxu0
        %v1341 = vadd.f32 %v1220, %v1340
        %v1342 = vpop.f32.mrf.mxu0
        %1343 = vmatprep.mubr.bf16.mxu0 0
        %1344 = vmatmul.mubr.bf16.gmra.mxu0 %v789
        %v1345 = vpop.f32.mrf.mxu0
        %v1346 = vadd.f32 %v1225, %v1345
        %v1347 = vpop.f32.mrf.mxu0
        %v1348 = vpop.f32.mrf.mxu0
        %v1349 = vadd.f32 %v1228, %v1348
        %v1350 = vpop.f32.mrf.mxu0
        %1351 = vmatprep.mubr.bf16.mxu0 0
        %1352 = vmatmul.mubr.bf16.gmra.mxu0 %v792
        %v1353 = vpop.f32.mrf.mxu0
        %v1354 = vadd.f32 %v1233, %v1353
        %v1355 = vpop.f32.mrf.mxu0
        %v1356 = vpop.f32.mrf.mxu0
        %v1357 = vadd.f32 %v1236, %v1356
        %v1358 = vpop.f32.mrf.mxu0
        %1359 = vmatprep.mubr.bf16.mxu0 0
        %1360 = vmatmul.mubr.bf16.gmra.mxu0 %v795
        %v1361 = vpop.f32.mrf.mxu0
        %v1362 = vadd.f32 %v1241, %v1361
        %v1363 = vpop.f32.mrf.mxu0
        %v1364 = vpop.f32.mrf.mxu0
        %v1365 = vadd.f32 %v1244, %v1364
        %v1366 = vpop.f32.mrf.mxu0
        %1367 = vmatprep.mubr.bf16.mxu0 0
        %1368 = vmatmul.mubr.bf16.gmra.mxu0 %v798
        %v1369 = vpop.f32.mrf.mxu0
        %v1370 = vadd.f32 %v1249, %v1369
        %v1371 = vpop.f32.mrf.mxu0
        %v1372 = vpop.f32.mrf.mxu0
        %v1373 = vadd.f32 %v1252, %v1372
        %v1374 = vpop.f32.mrf.mxu0
        %1375 = vmatprep.mubr.bf16.mxu0 0
        %1376 = vmatmul.mubr.bf16.gmra.mxu0 %v801
        %v1377 = vpop.f32.mrf.mxu0
        %v1378 = vadd.f32 %v1257, %v1377
        %v1379 = vpop.f32.mrf.mxu0
        %v1380 = vpop.f32.mrf.mxu0
        %v1381 = vadd.f32 %v1260, %v1380
        %v1382 = vpop.f32.mrf.mxu0
        %1383 = vmatprep.mubr.bf16.mxu0 0
        %1384 = vmatmul.mubr.bf16.gmra.mxu0 %v804
        %v1385 = vpop.f32.mrf.mxu0
        %v1386 = vadd.f32 %v1265, %v1385
        %v1387 = vpop.f32.mrf.mxu0
        %v1388 = vpop.f32.mrf.mxu0
        %v1389 = vadd.f32 %v1268, %v1388
        %v1390 = vpop.f32.mrf.mxu0
        %1391 = vmatprep.mubr.bf16.mxu0 0
        %1392 = vmatmul.mubr.bf16.gmra.mxu0 %v807
        %v1393 = vpop.f32.mrf.mxu0
        %v1394 = vadd.f32 %v1273, %v1393
        %v1395 = vpop.f32.mrf.mxu0
        %v1396 = vpop.f32.mrf.mxu0
        %v1397 = vadd.f32 %v1276, %v1396
        %v1398 = vpop.f32.mrf.mxu0
        %1399 = vdwg.mxu0
        %s1400 = scalar_lea.vmem [#allocation2], 32
        %v1401 = vld [vmem:[%s1400] sm:$0xff]
        %v1402 = vld [vmem:[%s1400 + $0x8] sm:$0xff]
        %v1403 = vld [vmem:[%s1400 + $0x10] sm:$0xff]
        %v1404 = vld [vmem:[%s1400 + $0x18] sm:$0xff]
        %v1405 = vld [vmem:[%s1400 + $0x20] sm:$0xff]
        %v1406 = vld [vmem:[%s1400 + $0x28] sm:$0xff]
        %v1407 = vld [vmem:[%s1400 + $0x30] sm:$0xff]
        %v1408 = vld [vmem:[%s1400 + $0x38] sm:$0xff]
        %v1409 = vld [vmem:[%s1400 + $0x40] sm:$0xff]
        %v1410 = vld [vmem:[%s1400 + $0x48] sm:$0xff]
        %v1411 = vld [vmem:[%s1400 + $0x50] sm:$0xff]
        %v1412 = vld [vmem:[%s1400 + $0x58] sm:$0xff]
        %v1413 = vld [vmem:[%s1400 + $0x60] sm:$0xff]
        %v1414 = vld [vmem:[%s1400 + $0x68] sm:$0xff]
        %v1415 = vld [vmem:[%s1400 + $0x70] sm:$0xff]
        %v1416 = vld [vmem:[%s1400 + $0x78] sm:$0xff]
        %v1417 = vpack.c.bf16 %v1402, %v1401
        %v1418 = vpack.c.bf16 %v1404, %v1403
        %v1419 = vpack.c.bf16 %v1406, %v1405
        %v1420 = vpack.c.bf16 %v1408, %v1407
        %v1421 = vpack.c.bf16 %v1410, %v1409
        %v1422 = vpack.c.bf16 %v1412, %v1411
        %v1423 = vpack.c.bf16 %v1414, %v1413
        %v1424 = vpack.c.bf16 %v1416, %v1415
        %s1425 = scalar_lea.vmem [#allocation8], 192
        %v1426 = vld [vmem:[%s1425] sm:$0xf]
        %v1427 = vld [vmem:[%s1425 + $0x4] sm:$0xf]
        %v1428 = vld [vmem:[%s1425 + $0x8] sm:$0xf]
        %v1429 = vld [vmem:[%s1425 + $0xc] sm:$0xf]
        %v1430 = vld [vmem:[%s1425 + $0x10] sm:$0xf]
        %v1431 = vld [vmem:[%s1425 + $0x14] sm:$0xf]
        %v1432 = vld [vmem:[%s1425 + $0x18] sm:$0xf]
        %v1433 = vld [vmem:[%s1425 + $0x1c] sm:$0xf]
        %v1442 = vunpack.c.l.b16 %v1426
        %v1443 = vunpack.c.l.b16 %v1427
        %v1444 = vunpack.c.l.b16 %v1428
        %v1445 = vunpack.c.l.b16 %v1429
        %v1446 = vunpack.c.l.b16 %v1430
        %v1447 = vunpack.c.l.b16 %v1431
        %v1448 = vunpack.c.l.b16 %v1432
        %v1449 = vunpack.c.l.b16 %v1433
        %v1450 = vpack.c.b16 %v1443, %v1442
        %v1451 = vpack.c.b16 %v1445, %v1444
        %v1452 = vpack.c.b16 %v1447, %v1446
        %v1453 = vpack.c.b16 %v1449, %v1448
        %v1459 = vsel %vm470, %v1417, 0
        %v1462 = vsel %vm470, %v1418, 0
        %v1465 = vsel %vm470, %v1419, 0
        %v1468 = vsel %vm470, %v1420, 0
        %v1471 = vsel %vm470, %v1421, 0
        %v1474 = vsel %vm470, %v1422, 0
        %v1477 = vsel %vm470, %v1423, 0
        %v1480 = vsel %vm470, %v1424, 0
        %1482 = vmatprep.subr.bf16.mxu0 0
        %1483 = vmatpush1.bf16.msra.mxu0 0
        %1484 = vmatprep.subr.bf16.mxu0 0
        %1485 = vmatpush1.bf16.msra.mxu0 0
        %1486 = vmatprep.subr.bf16.mxu0 0
        %1487 = vmatpush1.bf16.msra.mxu0 0
        %1488 = vmatprep.subr.bf16.mxu0 0
        %1489 = vmatpush1.bf16.msra.mxu0 0
        %1490 = vmatprep.subr.bf16.mxu0 0
        %1491 = vmatpush1.bf16.msra.mxu0 %v1453
        %1492 = vmatprep.subr.bf16.mxu0 0
        %1493 = vmatpush1.bf16.msra.mxu0 %v1452
        %1494 = vmatprep.subr.bf16.mxu0 0
        %1495 = vmatpush1.bf16.msra.mxu0 %v1451
        %1496 = vmatprep.subr.bf16.mxu0 0
        %1497 = vmatpush1.bf16.msra.mxu0 %v1450
        %1498 = vmatprep.subr.bf16.mxu0 0
        %1499 = vmatpush2.bf16.msra.mxu0 0
        %1500 = vmatprep.subr.bf16.mxu0 0
        %1501 = vmatpush2.bf16.msra.mxu0 0
        %1502 = vmatprep.subr.bf16.mxu0 0
        %1503 = vmatpush2.bf16.msra.mxu0 0
        %1504 = vmatprep.subr.bf16.mxu0 0
        %1505 = vmatpush2.bf16.msra.mxu0 0
        %1506 = vmatprep.subr.bf16.mxu0 0
        %1507 = vmatpush2.bf16.msra.mxu0 0
        %1508 = vmatprep.subr.bf16.mxu0 0
        %1509 = vmatpush2.bf16.msra.mxu0 0
        %1510 = vmatprep.subr.bf16.mxu0 0
        %1511 = vmatpush2.bf16.msra.mxu0 0
        %1512 = vmatprep.subr.bf16.mxu0 0
        %1513 = vmatpush2.bf16.msra.mxu0 0
        %1514 = vmatprep.mubr.bf16.mxu0 0
        %1515 = vmatmul.mubr.bf16.gmra.mxu0 %v1459
        %v1516 = vpop.f32.mrf.mxu0
        %v1517 = vadd.f32 0.0, %v1516
        %v1518 = vpop.f32.mrf.mxu0
        %v1519 = vpop.f32.mrf.mxu0
        %v1520 = vpop.f32.mrf.mxu0
        %1521 = vmatprep.mubr.bf16.mxu0 0
        %1522 = vmatmul.mubr.bf16.gmra.mxu0 %v1462
        %v1523 = vpop.f32.mrf.mxu0
        %v1524 = vadd.f32 0.0, %v1523
        %v1525 = vpop.f32.mrf.mxu0
        %v1526 = vpop.f32.mrf.mxu0
        %v1527 = vpop.f32.mrf.mxu0
        %1528 = vmatprep.mubr.bf16.mxu0 0
        %1529 = vmatmul.mubr.bf16.gmra.mxu0 %v1465
        %v1530 = vpop.f32.mrf.mxu0
        %v1531 = vadd.f32 0.0, %v1530
        %v1532 = vpop.f32.mrf.mxu0
        %v1533 = vpop.f32.mrf.mxu0
        %v1534 = vpop.f32.mrf.mxu0
        %1535 = vmatprep.mubr.bf16.mxu0 0
        %1536 = vmatmul.mubr.bf16.gmra.mxu0 %v1468
        %v1537 = vpop.f32.mrf.mxu0
        %v1538 = vadd.f32 0.0, %v1537
        %v1539 = vpop.f32.mrf.mxu0
        %v1540 = vpop.f32.mrf.mxu0
        %v1541 = vpop.f32.mrf.mxu0
        %1542 = vmatprep.mubr.bf16.mxu0 0
        %1543 = vmatmul.mubr.bf16.gmra.mxu0 %v1471
        %v1544 = vpop.f32.mrf.mxu0
        %v1545 = vadd.f32 0.0, %v1544
        %v1546 = vpop.f32.mrf.mxu0
        %v1547 = vpop.f32.mrf.mxu0
        %v1548 = vpop.f32.mrf.mxu0
        %1549 = vmatprep.mubr.bf16.mxu0 0
        %1550 = vmatmul.mubr.bf16.gmra.mxu0 %v1474
        %v1551 = vpop.f32.mrf.mxu0
        %v1552 = vadd.f32 0.0, %v1551
        %v1553 = vpop.f32.mrf.mxu0
        %v1554 = vpop.f32.mrf.mxu0
        %v1555 = vpop.f32.mrf.mxu0
        %1556 = vmatprep.mubr.bf16.mxu0 0
        %1557 = vmatmul.mubr.bf16.gmra.mxu0 %v1477
        %v1558 = vpop.f32.mrf.mxu0
        %v1559 = vadd.f32 0.0, %v1558
        %v1560 = vpop.f32.mrf.mxu0
        %v1561 = vpop.f32.mrf.mxu0
        %v1562 = vpop.f32.mrf.mxu0
        %1563 = vmatprep.mubr.bf16.mxu0 0
        %1564 = vmatmul.mubr.bf16.gmra.mxu0 %v1480
        %v1565 = vpop.f32.mrf.mxu0
        %v1566 = vadd.f32 0.0, %v1565
        %v1567 = vpop.f32.mrf.mxu0
        %v1568 = vpop.f32.mrf.mxu0
        %v1569 = vpop.f32.mrf.mxu0
        %1570 = vdwg.mxu0
        %v1571 = vadd.f32 %v844, %v1517
        %v1572 = vadd.f32 %v851, %v1524
        %v1573 = vadd.f32 %v858, %v1531
        %v1574 = vadd.f32 %v865, %v1538
        %v1575 = vadd.f32 %v872, %v1545
        %v1576 = vadd.f32 %v879, %v1552
        %v1577 = vadd.f32 %v886, %v1559
        %v1578 = vadd.f32 %v893, %v1566
        %s1579 = scalar_lea.vmem [#allocation8], 224
        %v1580 = vld [vmem:[%s1579] sm:$0xf]
        %v1581 = vld [vmem:[%s1579 + $0x4] sm:$0xf]
        %v1582 = vld [vmem:[%s1579 + $0x8] sm:$0xf]
        %v1583 = vld [vmem:[%s1579 + $0xc] sm:$0xf]
        %v1584 = vld [vmem:[%s1579 + $0x10] sm:$0xf]
        %v1585 = vld [vmem:[%s1579 + $0x14] sm:$0xf]
        %v1586 = vld [vmem:[%s1579 + $0x18] sm:$0xf]
        %v1587 = vld [vmem:[%s1579 + $0x1c] sm:$0xf]
        %v1596 = vunpack.c.l.b16 %v1580
        %v1597 = vunpack.c.l.b16 %v1581
        %v1598 = vunpack.c.l.b16 %v1582
        %v1599 = vunpack.c.l.b16 %v1583
        %v1600 = vunpack.c.l.b16 %v1584
        %v1601 = vunpack.c.l.b16 %v1585
        %v1602 = vunpack.c.l.b16 %v1586
        %v1603 = vunpack.c.l.b16 %v1587
        %v1604 = vpack.c.b16 %v1597, %v1596
        %v1605 = vpack.c.b16 %v1599, %v1598
        %v1606 = vpack.c.b16 %v1601, %v1600
        %v1607 = vpack.c.b16 %v1603, %v1602
        %1612 = vmatprep.subr.bf16.mxu0 0
        %1613 = vmatpush1.bf16.msra.mxu0 0
        %1614 = vmatprep.subr.bf16.mxu0 0
        %1615 = vmatpush1.bf16.msra.mxu0 0
        %1616 = vmatprep.subr.bf16.mxu0 0
        %1617 = vmatpush1.bf16.msra.mxu0 0
        %1618 = vmatprep.subr.bf16.mxu0 0
        %1619 = vmatpush1.bf16.msra.mxu0 0
        %1620 = vmatprep.subr.bf16.mxu0 0
        %1621 = vmatpush1.bf16.msra.mxu0 %v1607
        %1622 = vmatprep.subr.bf16.mxu0 0
        %1623 = vmatpush1.bf16.msra.mxu0 %v1606
        %1624 = vmatprep.subr.bf16.mxu0 0
        %1625 = vmatpush1.bf16.msra.mxu0 %v1605
        %1626 = vmatprep.subr.bf16.mxu0 0
        %1627 = vmatpush1.bf16.msra.mxu0 %v1604
        %1628 = vmatprep.subr.bf16.mxu0 0
        %1629 = vmatpush2.bf16.msra.mxu0 0
        %1630 = vmatprep.subr.bf16.mxu0 0
        %1631 = vmatpush2.bf16.msra.mxu0 0
        %1632 = vmatprep.subr.bf16.mxu0 0
        %1633 = vmatpush2.bf16.msra.mxu0 0
        %1634 = vmatprep.subr.bf16.mxu0 0
        %1635 = vmatpush2.bf16.msra.mxu0 0
        %1636 = vmatprep.subr.bf16.mxu0 0
        %1637 = vmatpush2.bf16.msra.mxu0 0
        %1638 = vmatprep.subr.bf16.mxu0 0
        %1639 = vmatpush2.bf16.msra.mxu0 0
        %1640 = vmatprep.subr.bf16.mxu0 0
        %1641 = vmatpush2.bf16.msra.mxu0 0
        %1642 = vmatprep.subr.bf16.mxu0 0
        %1643 = vmatpush2.bf16.msra.mxu0 0
        %1644 = vmatprep.mubr.bf16.mxu0 0
        %1645 = vmatmul.mubr.bf16.gmra.mxu0 %v1459
        %v1646 = vpop.f32.mrf.mxu0
        %v1647 = vadd.f32 0.0, %v1646
        %v1648 = vpop.f32.mrf.mxu0
        %v1649 = vpop.f32.mrf.mxu0
        %v1650 = vadd.f32 0.0, %v1649
        %v1651 = vpop.f32.mrf.mxu0
        %1652 = vmatprep.mubr.bf16.mxu0 0
        %1653 = vmatmul.mubr.bf16.gmra.mxu0 %v1462
        %v1654 = vpop.f32.mrf.mxu0
        %v1655 = vadd.f32 0.0, %v1654
        %v1656 = vpop.f32.mrf.mxu0
        %v1657 = vpop.f32.mrf.mxu0
        %v1658 = vadd.f32 0.0, %v1657
        %v1659 = vpop.f32.mrf.mxu0
        %1660 = vmatprep.mubr.bf16.mxu0 0
        %1661 = vmatmul.mubr.bf16.gmra.mxu0 %v1465
        %v1662 = vpop.f32.mrf.mxu0
        %v1663 = vadd.f32 0.0, %v1662
        %v1664 = vpop.f32.mrf.mxu0
        %v1665 = vpop.f32.mrf.mxu0
        %v1666 = vadd.f32 0.0, %v1665
        %v1667 = vpop.f32.mrf.mxu0
        %1668 = vmatprep.mubr.bf16.mxu0 0
        %1669 = vmatmul.mubr.bf16.gmra.mxu0 %v1468
        %v1670 = vpop.f32.mrf.mxu0
        %v1671 = vadd.f32 0.0, %v1670
        %v1672 = vpop.f32.mrf.mxu0
        %v1673 = vpop.f32.mrf.mxu0
        %v1674 = vadd.f32 0.0, %v1673
        %v1675 = vpop.f32.mrf.mxu0
        %1676 = vmatprep.mubr.bf16.mxu0 0
        %1677 = vmatmul.mubr.bf16.gmra.mxu0 %v1471
        %v1678 = vpop.f32.mrf.mxu0
        %v1679 = vadd.f32 0.0, %v1678
        %v1680 = vpop.f32.mrf.mxu0
        %v1681 = vpop.f32.mrf.mxu0
        %v1682 = vadd.f32 0.0, %v1681
        %v1683 = vpop.f32.mrf.mxu0
        %1684 = vmatprep.mubr.bf16.mxu0 0
        %1685 = vmatmul.mubr.bf16.gmra.mxu0 %v1474
        %v1686 = vpop.f32.mrf.mxu0
        %v1687 = vadd.f32 0.0, %v1686
        %v1688 = vpop.f32.mrf.mxu0
        %v1689 = vpop.f32.mrf.mxu0
        %v1690 = vadd.f32 0.0, %v1689
        %v1691 = vpop.f32.mrf.mxu0
        %1692 = vmatprep.mubr.bf16.mxu0 0
        %1693 = vmatmul.mubr.bf16.gmra.mxu0 %v1477
        %v1694 = vpop.f32.mrf.mxu0
        %v1695 = vadd.f32 0.0, %v1694
        %v1696 = vpop.f32.mrf.mxu0
        %v1697 = vpop.f32.mrf.mxu0
        %v1698 = vadd.f32 0.0, %v1697
        %v1699 = vpop.f32.mrf.mxu0
        %1700 = vmatprep.mubr.bf16.mxu0 0
        %1701 = vmatmul.mubr.bf16.gmra.mxu0 %v1480
        %v1702 = vpop.f32.mrf.mxu0
        %v1703 = vadd.f32 0.0, %v1702
        %v1704 = vpop.f32.mrf.mxu0
        %v1705 = vpop.f32.mrf.mxu0
        %v1706 = vadd.f32 0.0, %v1705
        %v1707 = vpop.f32.mrf.mxu0
        %1708 = vdwg.mxu0
        %v1709 = vadd.f32 %v1087, %v1647
        %v1710 = vadd.f32 %v1090, %v1650
        %v1711 = vadd.f32 %v1095, %v1655
        %v1712 = vadd.f32 %v1098, %v1658
        %v1713 = vadd.f32 %v1103, %v1663
        %v1714 = vadd.f32 %v1106, %v1666
        %v1715 = vadd.f32 %v1111, %v1671
        %v1716 = vadd.f32 %v1114, %v1674
        %v1717 = vadd.f32 %v1119, %v1679
        %v1718 = vadd.f32 %v1122, %v1682
        %v1719 = vadd.f32 %v1127, %v1687
        %v1720 = vadd.f32 %v1130, %v1690
        %v1721 = vadd.f32 %v1135, %v1695
        %v1722 = vadd.f32 %v1138, %v1698
        %v1723 = vadd.f32 %v1143, %v1703
        %v1724 = vadd.f32 %v1146, %v1706
        %s1725 = scalar_lea.vmem [#allocation8], 256
        %v1726 = vld [vmem:[%s1725] sm:$0xf]
        %v1727 = vld [vmem:[%s1725 + $0x4] sm:$0xf]
        %v1728 = vld [vmem:[%s1725 + $0x8] sm:$0xf]
        %v1729 = vld [vmem:[%s1725 + $0xc] sm:$0xf]
        %v1730 = vld [vmem:[%s1725 + $0x10] sm:$0xf]
        %v1731 = vld [vmem:[%s1725 + $0x14] sm:$0xf]
        %v1732 = vld [vmem:[%s1725 + $0x18] sm:$0xf]
        %v1733 = vld [vmem:[%s1725 + $0x1c] sm:$0xf]
        %v1742 = vunpack.c.l.b16 %v1726
        %v1743 = vunpack.c.l.b16 %v1727
        %v1744 = vunpack.c.l.b16 %v1728
        %v1745 = vunpack.c.l.b16 %v1729
        %v1746 = vunpack.c.l.b16 %v1730
        %v1747 = vunpack.c.l.b16 %v1731
        %v1748 = vunpack.c.l.b16 %v1732
        %v1749 = vunpack.c.l.b16 %v1733
        %v1750 = vpack.c.b16 %v1743, %v1742
        %v1751 = vpack.c.b16 %v1745, %v1744
        %v1752 = vpack.c.b16 %v1747, %v1746
        %v1753 = vpack.c.b16 %v1749, %v1748
        %1758 = vmatprep.subr.bf16.mxu0 0
        %1759 = vmatpush1.bf16.msra.mxu0 0
        %1760 = vmatprep.subr.bf16.mxu0 0
        %1761 = vmatpush1.bf16.msra.mxu0 0
        %1762 = vmatprep.subr.bf16.mxu0 0
        %1763 = vmatpush1.bf16.msra.mxu0 0
        %1764 = vmatprep.subr.bf16.mxu0 0
        %1765 = vmatpush1.bf16.msra.mxu0 0
        %1766 = vmatprep.subr.bf16.mxu0 0
        %1767 = vmatpush1.bf16.msra.mxu0 %v1753
        %1768 = vmatprep.subr.bf16.mxu0 0
        %1769 = vmatpush1.bf16.msra.mxu0 %v1752
        %1770 = vmatprep.subr.bf16.mxu0 0
        %1771 = vmatpush1.bf16.msra.mxu0 %v1751
        %1772 = vmatprep.subr.bf16.mxu0 0
        %1773 = vmatpush1.bf16.msra.mxu0 %v1750
        %1774 = vmatprep.subr.bf16.mxu0 0
        %1775 = vmatpush2.bf16.msra.mxu0 0
        %1776 = vmatprep.subr.bf16.mxu0 0
        %1777 = vmatpush2.bf16.msra.mxu0 0
        %1778 = vmatprep.subr.bf16.mxu0 0
        %1779 = vmatpush2.bf16.msra.mxu0 0
        %1780 = vmatprep.subr.bf16.mxu0 0
        %1781 = vmatpush2.bf16.msra.mxu0 0
        %1782 = vmatprep.subr.bf16.mxu0 0
        %1783 = vmatpush2.bf16.msra.mxu0 0
        %1784 = vmatprep.subr.bf16.mxu0 0
        %1785 = vmatpush2.bf16.msra.mxu0 0
        %1786 = vmatprep.subr.bf16.mxu0 0
        %1787 = vmatpush2.bf16.msra.mxu0 0
        %1788 = vmatprep.subr.bf16.mxu0 0
        %1789 = vmatpush2.bf16.msra.mxu0 0
        %1790 = vmatprep.mubr.bf16.mxu0 0
        %1791 = vmatmul.mubr.bf16.gmra.mxu0 %v1459
        %v1792 = vpop.f32.mrf.mxu0
        %v1793 = vadd.f32 0.0, %v1792
        %v1794 = vpop.f32.mrf.mxu0
        %v1795 = vpop.f32.mrf.mxu0
        %v1796 = vadd.f32 0.0, %v1795
        %v1797 = vpop.f32.mrf.mxu0
        %1798 = vmatprep.mubr.bf16.mxu0 0
        %1799 = vmatmul.mubr.bf16.gmra.mxu0 %v1462
        %v1800 = vpop.f32.mrf.mxu0
        %v1801 = vadd.f32 0.0, %v1800
        %v1802 = vpop.f32.mrf.mxu0
        %v1803 = vpop.f32.mrf.mxu0
        %v1804 = vadd.f32 0.0, %v1803
        %v1805 = vpop.f32.mrf.mxu0
        %1806 = vmatprep.mubr.bf16.mxu0 0
        %1807 = vmatmul.mubr.bf16.gmra.mxu0 %v1465
        %v1808 = vpop.f32.mrf.mxu0
        %v1809 = vadd.f32 0.0, %v1808
        %v1810 = vpop.f32.mrf.mxu0
        %v1811 = vpop.f32.mrf.mxu0
        %v1812 = vadd.f32 0.0, %v1811
        %v1813 = vpop.f32.mrf.mxu0
        %1814 = vmatprep.mubr.bf16.mxu0 0
        %1815 = vmatmul.mubr.bf16.gmra.mxu0 %v1468
        %v1816 = vpop.f32.mrf.mxu0
        %v1817 = vadd.f32 0.0, %v1816
        %v1818 = vpop.f32.mrf.mxu0
        %v1819 = vpop.f32.mrf.mxu0
        %v1820 = vadd.f32 0.0, %v1819
        %v1821 = vpop.f32.mrf.mxu0
        %1822 = vmatprep.mubr.bf16.mxu0 0
        %1823 = vmatmul.mubr.bf16.gmra.mxu0 %v1471
        %v1824 = vpop.f32.mrf.mxu0
        %v1825 = vadd.f32 0.0, %v1824
        %v1826 = vpop.f32.mrf.mxu0
        %v1827 = vpop.f32.mrf.mxu0
        %v1828 = vadd.f32 0.0, %v1827
        %v1829 = vpop.f32.mrf.mxu0
        %1830 = vmatprep.mubr.bf16.mxu0 0
        %1831 = vmatmul.mubr.bf16.gmra.mxu0 %v1474
        %v1832 = vpop.f32.mrf.mxu0
        %v1833 = vadd.f32 0.0, %v1832
        %v1834 = vpop.f32.mrf.mxu0
        %v1835 = vpop.f32.mrf.mxu0
        %v1836 = vadd.f32 0.0, %v1835
        %v1837 = vpop.f32.mrf.mxu0
        %1838 = vmatprep.mubr.bf16.mxu0 0
        %1839 = vmatmul.mubr.bf16.gmra.mxu0 %v1477
        %v1840 = vpop.f32.mrf.mxu0
        %v1841 = vadd.f32 0.0, %v1840
        %v1842 = vpop.f32.mrf.mxu0
        %v1843 = vpop.f32.mrf.mxu0
        %v1844 = vadd.f32 0.0, %v1843
        %v1845 = vpop.f32.mrf.mxu0
        %1846 = vmatprep.mubr.bf16.mxu0 0
        %1847 = vmatmul.mubr.bf16.gmra.mxu0 %v1480
        %v1848 = vpop.f32.mrf.mxu0
        %v1849 = vadd.f32 0.0, %v1848
        %v1850 = vpop.f32.mrf.mxu0
        %v1851 = vpop.f32.mrf.mxu0
        %v1852 = vadd.f32 0.0, %v1851
        %v1853 = vpop.f32.mrf.mxu0
        %1854 = vdwg.mxu0
        %v1855 = vadd.f32 %v1338, %v1793
        %v1856 = vadd.f32 %v1341, %v1796
        %v1857 = vadd.f32 %v1346, %v1801
        %v1858 = vadd.f32 %v1349, %v1804
        %v1859 = vadd.f32 %v1354, %v1809
        %v1860 = vadd.f32 %v1357, %v1812
        %v1861 = vadd.f32 %v1362, %v1817
        %v1862 = vadd.f32 %v1365, %v1820
        %v1863 = vadd.f32 %v1370, %v1825
        %v1864 = vadd.f32 %v1373, %v1828
        %v1865 = vadd.f32 %v1378, %v1833
        %v1866 = vadd.f32 %v1381, %v1836
        %v1867 = vadd.f32 %v1386, %v1841
        %v1868 = vadd.f32 %v1389, %v1844
        %v1869 = vadd.f32 %v1394, %v1849
        %v1870 = vadd.f32 %v1397, %v1852
        %vm1887 = vcmask 1046528
        %v1888 = vrot.slane %v1709, 1
        %v1889 = vrot.slane %v1710, 1
        %v1890 = vsel %vm1887, %v1888, %v1889
        %v1891 = vrot.slane %v1711, 1
        %v1892 = vrot.slane %v1712, 1
        %v1893 = vsel %vm1887, %v1891, %v1892
        %v1894 = vrot.slane %v1713, 1
        %v1895 = vrot.slane %v1714, 1
        %v1896 = vsel %vm1887, %v1894, %v1895
        %v1897 = vrot.slane %v1715, 1
        %v1898 = vrot.slane %v1716, 1
        %v1899 = vsel %vm1887, %v1897, %v1898
        %v1900 = vrot.slane %v1717, 1
        %v1901 = vrot.slane %v1718, 1
        %v1902 = vsel %vm1887, %v1900, %v1901
        %v1903 = vrot.slane %v1719, 1
        %v1904 = vrot.slane %v1720, 1
        %v1905 = vsel %vm1887, %v1903, %v1904
        %v1906 = vrot.slane %v1721, 1
        %v1907 = vrot.slane %v1722, 1
        %v1908 = vsel %vm1887, %v1906, %v1907
        %v1909 = vrot.slane %v1723, 1
        %v1910 = vrot.slane %v1724, 1
        %v1911 = vsel %vm1887, %v1909, %v1910
        %v1920 = vadd.f32 %v1571, %v1890
        %v1921 = vadd.f32 %v1572, %v1893
        %v1922 = vadd.f32 %v1573, %v1896
        %v1923 = vadd.f32 %v1574, %v1899
        %v1924 = vadd.f32 %v1575, %v1902
        %v1925 = vadd.f32 %v1576, %v1905
        %v1926 = vadd.f32 %v1577, %v1908
        %v1927 = vadd.f32 %v1578, %v1911
        %vm1944 = vcmask 1045504
        %v1945 = vrot.slane %v1855, 2
        %v1946 = vrot.slane %v1856, 2
        %v1947 = vsel %vm1944, %v1945, %v1946
        %v1948 = vrot.slane %v1857, 2
        %v1949 = vrot.slane %v1858, 2
        %v1950 = vsel %vm1944, %v1948, %v1949
        %v1951 = vrot.slane %v1859, 2
        %v1952 = vrot.slane %v1860, 2
        %v1953 = vsel %vm1944, %v1951, %v1952
        %v1954 = vrot.slane %v1861, 2
        %v1955 = vrot.slane %v1862, 2
        %v1956 = vsel %vm1944, %v1954, %v1955
        %v1957 = vrot.slane %v1863, 2
        %v1958 = vrot.slane %v1864, 2
        %v1959 = vsel %vm1944, %v1957, %v1958
        %v1960 = vrot.slane %v1865, 2
        %v1961 = vrot.slane %v1866, 2
        %v1962 = vsel %vm1944, %v1960, %v1961
        %v1963 = vrot.slane %v1867, 2
        %v1964 = vrot.slane %v1868, 2
        %v1965 = vsel %vm1944, %v1963, %v1964
        %v1966 = vrot.slane %v1869, 2
        %v1967 = vrot.slane %v1870, 2
        %v1968 = vsel %vm1944, %v1966, %v1967
        %v1977 = vadd.f32 %v1920, %v1947
        %v1978 = vadd.f32 %v1921, %v1950
        %v1979 = vadd.f32 %v1922, %v1953
        %v1980 = vadd.f32 %v1923, %v1956
        %v1981 = vadd.f32 %v1924, %v1959
        %v1982 = vadd.f32 %v1925, %v1962
        %v1983 = vadd.f32 %v1926, %v1965
        %v1984 = vadd.f32 %v1927, %v1968
        %v1985 = vld [vmem:[%s5] sm:$0x1]
        %v1987 = vlaneseq
        %v1988 = vshrl.u32 %v1987, 7
        %v1989 = vsub.s32 0, %v1988
        %v1990 = vrot.slane %v1985, %v1989
        %v1992 = vadd.f32 %v1977, %v1990
        %v1993 = vadd.f32 %v1978, %v1990
        %v1994 = vadd.f32 %v1979, %v1990
        %v1995 = vadd.f32 %v1980, %v1990
        %v1996 = vadd.f32 %v1981, %v1990
        %v1997 = vadd.f32 %v1982, %v1990
        %v1998 = vadd.f32 %v1983, %v1990
        %v1999 = vadd.f32 %v1984, %v1990
        %v2000 = vxor.u32 %v1992, 2147483648
        %v2001 = vxor.u32 %v1993, 2147483648
        %v2002 = vxor.u32 %v1994, 2147483648
        %v2003 = vxor.u32 %v1995, 2147483648
        %v2004 = vxor.u32 %v1996, 2147483648
        %v2005 = vxor.u32 %v1997, 2147483648
        %v2006 = vxor.u32 %v1998, 2147483648
        %v2007 = vxor.u32 %v1999, 2147483648
        %v2008 = vmul.f32 %v2000, 1.442695
        %v2009 = vpow.pop %v2008
        %v2010 = vmul.f32 %v2001, 1.442695
        %v2011 = vpow.pop %v2010
        %v2012 = vmul.f32 %v2002, 1.442695
        %v2013 = vpow.pop %v2012
        %v2014 = vmul.f32 %v2003, 1.442695
        %v2015 = vpow.pop %v2014
        %v2016 = vmul.f32 %v2004, 1.442695
        %v2017 = vpow.pop %v2016
        %v2018 = vmul.f32 %v2005, 1.442695
        %v2019 = vpow.pop %v2018
        %v2020 = vmul.f32 %v2006, 1.442695
        %v2021 = vpow.pop %v2020
        %v2022 = vmul.f32 %v2007, 1.442695
        %v2023 = vpow.pop %v2022
        %v2024 = vadd.f32 %v2009, 1.0
        %v2025 = vadd.f32 %v2011, 1.0
        %v2026 = vadd.f32 %v2013, 1.0
        %v2027 = vadd.f32 %v2015, 1.0
        %v2028 = vadd.f32 %v2017, 1.0
        %v2029 = vadd.f32 %v2019, 1.0
        %v2030 = vadd.f32 %v2021, 1.0
        %v2031 = vadd.f32 %v2023, 1.0
        %v2032 = vrcp.pop %v2024
        %v2033 = vmul.f32 1.0, %v2032
        %v2034 = vrcp.pop %v2025
        %v2035 = vmul.f32 1.0, %v2034
        %v2036 = vrcp.pop %v2026
        %v2037 = vmul.f32 1.0, %v2036
        %v2038 = vrcp.pop %v2027
        %v2039 = vmul.f32 1.0, %v2038
        %v2040 = vrcp.pop %v2028
        %v2041 = vmul.f32 1.0, %v2040
        %v2042 = vrcp.pop %v2029
        %v2043 = vmul.f32 1.0, %v2042
        %v2044 = vrcp.pop %v2030
        %v2045 = vmul.f32 1.0, %v2044
        %v2046 = vrcp.pop %v2031
        %v2047 = vmul.f32 1.0, %v2046
        %v2048 = vtanh.pop %v1992
        %v2049 = vtanh.pop %v1993
        %v2050 = vtanh.pop %v1994
        %v2051 = vtanh.pop %v1995
        %v2052 = vtanh.pop %v1996
        %v2053 = vtanh.pop %v1997
        %v2054 = vtanh.pop %v1998
        %v2055 = vtanh.pop %v1999
        %v2056 = vmul.f32 %v2033, %v462
        %v2057 = vmul.f32 %v2035, %v463
        %v2058 = vmul.f32 %v2037, %v464
        %v2059 = vmul.f32 %v2039, %v465
        %v2060 = vmul.f32 %v2041, %v466
        %v2061 = vmul.f32 %v2043, %v467
        %v2062 = vmul.f32 %v2045, %v468
        %v2063 = vmul.f32 %v2047, %v469
        %v2064 = vsub.f32 1.0, %v2033
        %v2065 = vsub.f32 1.0, %v2035
        %v2066 = vsub.f32 1.0, %v2037
        %v2067 = vsub.f32 1.0, %v2039
        %v2068 = vsub.f32 1.0, %v2041
        %v2069 = vsub.f32 1.0, %v2043
        %v2070 = vsub.f32 1.0, %v2045
        %v2071 = vsub.f32 1.0, %v2047
        %2080 = vrot.lane.b32.xlu0 %v2064, 96
        %v2081 = vpop.permute.xlu0 %2080
        %2082 = vrot.lane.b32.xlu0 %v2065, 96
        %v2083 = vpop.permute.xlu0 %2082
        %2084 = vrot.lane.b32.xlu0 %v2066, 96
        %v2085 = vpop.permute.xlu0 %2084
        %2086 = vrot.lane.b32.xlu0 %v2067, 96
        %v2087 = vpop.permute.xlu0 %2086
        %2088 = vrot.lane.b32.xlu0 %v2068, 96
        %v2089 = vpop.permute.xlu0 %2088
        %2090 = vrot.lane.b32.xlu0 %v2069, 96
        %v2091 = vpop.permute.xlu0 %2090
        %2092 = vrot.lane.b32.xlu0 %v2070, 96
        %v2093 = vpop.permute.xlu0 %2092
        %2094 = vrot.lane.b32.xlu0 %v2071, 96
        %v2095 = vpop.permute.xlu0 %2094
        %v2104 = vmul.f32 %v2056, %v2081
        %v2105 = vmul.f32 %v2057, %v2083
        %v2106 = vmul.f32 %v2058, %v2085
        %v2107 = vmul.f32 %v2059, %v2087
        %v2108 = vmul.f32 %v2060, %v2089
        %v2109 = vmul.f32 %v2061, %v2091
        %v2110 = vmul.f32 %v2062, %v2093
        %v2111 = vmul.f32 %v2063, %v2095
        %2120 = vrot.lane.b32.xlu0 %v2048, 96
        %v2121 = vpop.permute.xlu0 %2120
        %2122 = vrot.lane.b32.xlu0 %v2049, 96
        %v2123 = vpop.permute.xlu0 %2122
        %2124 = vrot.lane.b32.xlu0 %v2050, 96
        %v2125 = vpop.permute.xlu0 %2124
        %2126 = vrot.lane.b32.xlu0 %v2051, 96
        %v2127 = vpop.permute.xlu0 %2126
        %2128 = vrot.lane.b32.xlu0 %v2052, 96
        %v2129 = vpop.permute.xlu0 %2128
        %2130 = vrot.lane.b32.xlu0 %v2053, 96
        %v2131 = vpop.permute.xlu0 %2130
        %2132 = vrot.lane.b32.xlu0 %v2054, 96
        %v2133 = vpop.permute.xlu0 %2132
        %2134 = vrot.lane.b32.xlu0 %v2055, 96
        %v2135 = vpop.permute.xlu0 %2134
        %v2144 = vmul.f32 %v2033, %v2121
        %v2145 = vmul.f32 %v2035, %v2123
        %v2146 = vmul.f32 %v2037, %v2125
        %v2147 = vmul.f32 %v2039, %v2127
        %v2148 = vmul.f32 %v2041, %v2129
        %v2149 = vmul.f32 %v2043, %v2131
        %v2150 = vmul.f32 %v2045, %v2133
        %v2151 = vmul.f32 %v2047, %v2135
        %2160 = vrot.lane.b32.xlu0 %v2144, 96
        %v2161 = vpop.permute.xlu0 %2160
        %2162 = vrot.lane.b32.xlu0 %v2145, 96
        %v2163 = vpop.permute.xlu0 %2162
        %2164 = vrot.lane.b32.xlu0 %v2146, 96
        %v2165 = vpop.permute.xlu0 %2164
        %2166 = vrot.lane.b32.xlu0 %v2147, 96
        %v2167 = vpop.permute.xlu0 %2166
        %2168 = vrot.lane.b32.xlu0 %v2148, 96
        %v2169 = vpop.permute.xlu0 %2168
        %2170 = vrot.lane.b32.xlu0 %v2149, 96
        %v2171 = vpop.permute.xlu0 %2170
        %2172 = vrot.lane.b32.xlu0 %v2150, 96
        %v2173 = vpop.permute.xlu0 %2172
        %2174 = vrot.lane.b32.xlu0 %v2151, 96
        %v2175 = vpop.permute.xlu0 %2174
        %v2184 = vadd.f32 %v2104, %v2161
        %v2185 = vadd.f32 %v2105, %v2163
        %v2186 = vadd.f32 %v2106, %v2165
        %v2187 = vadd.f32 %v2107, %v2167
        %v2188 = vadd.f32 %v2108, %v2169
        %v2189 = vadd.f32 %v2109, %v2171
        %v2190 = vadd.f32 %v2110, %v2173
        %v2191 = vadd.f32 %v2111, %v2175
        %2192 = vst.msk [vmem:[%s323] sm:$0xff] %vm523, %v2184
        %2193 = vst.msk [vmem:[%s323 + $0x8] sm:$0xff] %vm523, %v2185
        %2194 = vst.msk [vmem:[%s323 + $0x10] sm:$0xff] %vm523, %v2186
        %2195 = vst.msk [vmem:[%s323 + $0x18] sm:$0xff] %vm523, %v2187
        %2196 = vst.msk [vmem:[%s323 + $0x20] sm:$0xff] %vm523, %v2188
        %2197 = vst.msk [vmem:[%s323 + $0x28] sm:$0xff] %vm523, %v2189
        %2198 = vst.msk [vmem:[%s323 + $0x30] sm:$0xff] %vm523, %v2190
        %2199 = vst.msk [vmem:[%s323 + $0x38] sm:$0xff] %vm523, %v2191
        %s2200 = sand.u32 %s170, 1
        %s2201 = scalar_lea.sflag [#allocation5], %s2200
        %s2202 = sand.u32 %s170, 1
        %s2203 = smul.addr %s2202, 64
        %s2204 = scalar_lea.vmem [#allocation9], %s2203
        // Predicated region
        $region57: #{tpu_custom_call.1} parent=43 // pred_check
          %p2205 = pneg %p180
        $region58: #{tpu_custom_call.1} parent=43 // pred_check_branch
          %2207 = sbr.rel (%p2205) target = $region60
        $region59: #{tpu_custom_call.1} parent=43 // pred_region
          %s2209 = ssub.s32 1024, 1024
          %2210 = vsyncadd %s2201, %s2209
          %s2211 = smul.addr %s26, 8
          %s2212 = smul.addr %s2211, 128
          %s2213 = scalar_lea.hbm %s6, %s2212
          %s2214 = sshll.u32 %s2204, 4
          %s2215 = int_to_ptr.vmem [resolvable:$true] %s2214
          %2220 = dma.vmem_to_hbm [thread:$0]  %s2215, 1024, %s2213, %s2201, 128, 128, 8
        $region60: #{tpu_custom_call.1} parent=43 // pred_fallthru
          _
      $region44: #{tpu_custom_call.1} parent=5 // pred_fallthru
        _
      %p2221 = scmp.le.s32.totalorder 2, %s21
      // Predicated region
      $region61: #{tpu_custom_call.1} parent=5 // pred_check
        %p2222 = pneg %p2221
      $region62: #{tpu_custom_call.1} parent=5 // pred_check_branch
        %2224 = sbr.rel (%p2222) target = $region64
      $region63: #{tpu_custom_call.1} parent=5 // pred_region
        %s2225 = ssub.s32 %s21, 2
        // Predicated region
        $region65: #{tpu_custom_call.1} parent=63 // pred_check
          %p2226 = pneg %p186
        $region66: #{tpu_custom_call.1} parent=63 // pred_check_branch
          %2228 = sbr.rel (%p2226) target = $region68
        $region67: #{tpu_custom_call.1} parent=63 // pred_region
          %s2229 = sand.u32 %s171, 1
          %s2230 = scalar_lea.sflag [#allocation5], %s2229
          %s2231 = sand.u32 %s171, 1
          %s2232 = smul.addr %s2231, 64
          %s2233 = scalar_lea.vmem [#allocation9], %s2232
          %2234 = dma.done %s2230, 1024
        $region68: #{tpu_custom_call.1} parent=63 // pred_fallthru
          _
      $region64: #{tpu_custom_call.1} parent=5 // pred_fallthru
        _
    $region6: #{tpu_custom_call.1} parent=1 // loop_footer
      %s25 = sadd.s32 1, %s21
    $region7: #{tpu_custom_call.1} parent=1 // loop_footer_branch
      %20 = sbr.rel target = $region3
    $region8: #{tpu_custom_call.1} parent=1 // loop_exit
      _
    %2235 = vsyncpa [#allocation4], 1
    %s2236 = scalar_lea.sflag [#allocation4], 1
    %2237 = vsyncpa %s2236, 1
    %2238 = vsyncpa [#allocation7], 1
    %s2239 = scalar_lea.sflag [#allocation7], 1
    %2240 = vsyncpa %s2239, 1
    %2241 = vsyncpa [#allocation5], 1
    %s2242 = scalar_lea.sflag [#allocation5], 1
    %2243 = vsyncpa %s2242, 1

</llo_original>
